<compile_context>
chip_gen: v5e
topology: v5e:2x2
jax: 0.10.0
libtpu: 0.0.40
codegen_flags: <defaults>
</compile_context>

<pallas_src>
import numpy as np
import jax
import jax.numpy as jnp
from jax.experimental import pallas as pl
from jax.experimental.pallas import tpu as pltpu


# --------------------------------------------------------------------------
# Host-side constant builders (plain numpy; run once at parameter-pack time)
# --------------------------------------------------------------------------
def _pool_matrix(n_in):
    """AvgPool2d(kernel=3, stride=2, padding=1), count_include_pad=True (1/3 per axis)."""
    n_out = (n_in - 1) // 2 + 1
    m = np.zeros((n_out, n_in), np.float32)
    for i in range(n_out):
        for d in range(3):
            h = 2 * i + d - 1
            if 0 <= h < n_in:
                m[i, h] += 1.0 / 3.0
    return m


def _bilinear_matrix(n_in, scale):
    """nn.Upsample(mode='bilinear', align_corners=False) 1-D interpolation matrix."""
    n_out = n_in * scale
    m = np.zeros((n_out, n_in), np.float32)
    for i in range(n_out):
        src = max((i + 0.5) / scale - 0.5, 0.0)
        h0 = min(int(np.floor(src)), n_in - 1)
        h1 = min(h0 + 1, n_in - 1)
        lam = src - h0
        m[i, h0] += 1.0 - lam
        m[i, h1] += lam
    return m


def _conv_col_mat_fused(w, w_sp):
    """Fused-tap block-Toeplitz matrix for a 3x3 conv (pad=1) in (H, W*Cin) layout.

    Returns M of shape (3*w_sp*Cin, w_sp*Cout) such that
      conv(x)[h] = [x[h-1] | x[h] | x[h+1]]_flat @ M     (zero rows at borders),
    i.e. the dx taps + channel mix + all 3 dy taps live in ONE contraction.
    """
    _, _, cin, cout = w.shape
    m = np.zeros((3, w_sp * cin, w_sp * cout), np.float32)
    for dy in range(3):
        for wo in range(w_sp):
            for dx in range(3):
                wi = wo + dx - 1
                if 0 <= wi < w_sp:
                    m[dy, wi * cin:(wi + 1) * cin, wo * cout:(wo + 1) * cout] = w[dy, dx]
    return m.reshape(3 * w_sp * cin, w_sp * cout)


def _pick_b_tile(n, h):
    """Images per grid step: largest divisor of n (<=8) keeping B*H/4 a multiple
    of 8 (aligned sublane rolls), preferring grid length >= 2 (v7x megacore)."""
    divs = [d for d in range(1, n + 1) if n % d == 0 and d <= 8]
    aligned = [d for d in divs if (d * h) % 32 == 0]
    cand = aligned or divs
    multi = [d for d in cand if n // d >= 2]
    return (multi or cand)[-1]


def pack_constants(params, H, W, C, b_tile):
    """Build the ordered tuple of kernel constants.

    Order (must match _feature_block_kernel / feature_block_forward):
      0..9  : fused conv matrices + bias rows  (BA,bA, BB,bB, BC,bC, BD,bD, BE,bE)
      10..13: avgpool   PH1, RP1, PH2, RP2                       (f32)
      14..18: upsample  U2H, RUP1, U4H, RUP2, RA                 (f32 / bf16)
      19..24: boundary-row masks M0/ML at full / half / quarter resolution
    """
    bf, f32 = jnp.bfloat16, np.float32

    def fused_group(names, w_sp):
        mats, biases = [], []
        for name in names:
            w, b = params[name]
            mats.append(_conv_col_mat_fused(np.asarray(w, f32), w_sp))
            biases.append(np.tile(np.asarray(b, f32), w_sp))
        return (jnp.asarray(np.concatenate(mats, axis=1), bf),
                jnp.asarray(np.concatenate(biases)[None, :], jnp.float32))

    BA, bA = fused_group(['d1c1', 'd1cd'], W)            # conv1 + downsample of down_1
    BB, bB = fused_group(['d1c2'], W)                     # conv2 of down_1
    BC, bC = fused_group(['d2c1', 'd2cd', 'u1'], W // 2)  # conv1 + downsample of down_2 + up_1 conv
    BD, bD = fused_group(['d2c2'], W // 2)                # conv2 of down_2
    BE, bE = fused_group(['u2'], W // 4)                  # up_2 conv

    eye_b = np.eye(b_tile, dtype=f32)
    ph1 = np.kron(eye_b, _pool_matrix(H))                 # (B*H/2, B*H)
    ph2 = np.kron(eye_b, _pool_matrix(H // 2))            # (B*H/4, B*H/2)
    rp1 = np.kron(_pool_matrix(W).T, np.eye(2 * C, dtype=f32))        # (W*2C, W/2*2C)
    rp2 = np.kron(_pool_matrix(W // 2).T, np.eye(4 * C, dtype=f32))   # (W/2*4C, W/4*4C)

    u2h = np.kron(eye_b, _bilinear_matrix(H // 2, 2))     # (B*H, B*H/2)
    u4h = np.kron(eye_b, _bilinear_matrix(H // 4, 4))     # (B*H, B*H/4)
    wa = np.asarray(params['wa'], f32)
    wb = np.asarray(params['wb'], f32)
    wc = np.asarray(params['wc'], f32)
    rup1 = np.kron(_bilinear_matrix(W // 2, 2).T, wb)     # (W/2*2C, W*Co)
    rup2 = np.kron(_bilinear_matrix(W // 4, 4).T, wc)     # (W/4*4C, W*Co)
    ra = np.kron(np.eye(W, dtype=f32), wa)                # (W*C,    W*Co)

    def masks(h_sp):
        r = b_tile * h_sp
        m0 = np.ones((r, 1), f32)
        m0[0::h_sp] = 0.0            # zero the "row above" contribution at image tops
        ml = np.ones((r, 1), f32)
        ml[h_sp - 1::h_sp] = 0.0     # zero the "row below" contribution at image bottoms
        return jnp.asarray(m0), jnp.asarray(ml)

    m01, ml1 = masks(H)
    m02, ml2 = masks(H // 2)
    m04, ml4 = masks(H // 4)

    return (BA, bA, BB, bB, BC, bC, BD, bD, BE, bE,
            jnp.asarray(ph1), jnp.asarray(rp1), jnp.asarray(ph2), jnp.asarray(rp2),
            jnp.asarray(u2h), jnp.asarray(rup1, bf), jnp.asarray(u4h),
            jnp.asarray(rup2, bf), jnp.asarray(ra, bf),
            m01, ml1, m02, ml2, m04, ml4)


def _flops_per_block(b, H, W, C, Co):
    r1, r2, r4 = b * H, b * H // 2, b * H // 4
    shapes = [
        (r1, 3 * W * C, 2 * W * 2 * C),                              # group A
        (r1, 3 * W * 2 * C, W * 2 * C),                              # group B
        (r2, r1, W * 2 * C), (r2, W * 2 * C, (W // 2) * 2 * C),      # pool 1
        (r2, 3 * (W // 2) * 2 * C, (W // 2) * (4 * C + 4 * C + 2 * C)),  # group C
        (r2, 3 * (W // 2) * 4 * C, (W // 2) * 4 * C),                # group D
        (r4, r2, (W // 2) * 4 * C), (r4, (W // 2) * 4 * C, (W // 4) * 4 * C),  # pool 2
        (r4, 3 * (W // 4) * 4 * C, (W // 4) * 4 * C),                # group E
        (r1, W * C, W * Co),                                         # bottle on x
        (r2, (W // 2) * 2 * C, W * Co), (r1, r2, W * Co),            # up_1 path
        (r4, (W // 4) * 4 * C, W * Co), (r1, r4, W * Co),            # up_2 path
    ]
    return sum(2 * m * k * n for m, k, n in shapes)


# --------------------------------------------------------------------------
# The fused Pallas kernel (one grid step == B_TILE images)
# --------------------------------------------------------------------------
def _feature_block_kernel(
        x_ref,
        BA, bA, BB, bB, BC, bC, BD, bD, BE, bE,
        PH1, RP1, PH2, RP2,
        U2H, RUP1, U4H, RUP2, RA,
        M01, ML1, M02, ML2, M04, ML4,
        o_ref):
    f32, bf16 = jnp.float32, jnp.bfloat16

    def mm(a, b):
        return jnp.dot(a, b, preferred_element_type=f32)

    def trip(af, m0, ml):
        """bf16 lane-concat [x[h-1] | x[h] | x[h+1]] with per-image zero padding.

        Vertical taps via XLU sublane rolls + 0/1 boundary masks (VPU) instead
        of shift matmuls; the concat fuses all 3 dy taps into one contraction.
        """
        r = af.shape[0]
        a_m = pltpu.roll(af, 1, axis=0) * m0          # row h <- x[h-1]
        a_p = pltpu.roll(af, r - 1, axis=0) * ml      # row h <- x[h+1]
        return jnp.concatenate([a_m, af, a_p], axis=-1).astype(bf16)

    x = x_ref[...]                                    # (B*H, W*C) f32

    # ---- down_1 : BasicBlock(C -> 2C) at full res (conv1 & downsample fused) ----
    t_a = trip(x, M01[...], ML1[...])                 # (R1, 3*W*C)
    out_a = mm(t_a, BA[...]) + bA[...]                # (R1, 2*W*2C) f32 epilogue
    n1 = BB.shape[0] // 3                             # W*2C
    y1 = jnp.maximum(out_a[:, :n1], 0.0)
    res1 = out_a[:, n1:]
    t_b = trip(y1, M01[...], ML1[...])
    h1 = jnp.maximum(mm(t_b, BB[...]) + bB[...] + res1, 0.0)

    # avgpool(3, s2, p1): batched block-diag row mix x kron(Pw^T, I) col mix (f32)
    x1 = mm(mm(PH1[...], h1), RP1[...])               # (R2, W/2*2C)

    # ---- down_2 conv1 + downsample + up_1 conv share the same input trip ----
    t_c = trip(x1, M02[...], ML2[...])
    out_c = mm(t_c, BC[...]) + bC[...]                # (R2, W/2*(4C+4C+2C))
    n2 = BD.shape[0] // 3                             # W/2*4C
    y2 = jnp.maximum(out_c[:, :n2], 0.0)
    res2 = out_c[:, n2:2 * n2]
    u1 = out_c[:, 2 * n2:]                            # (R2, W/2*2C), conv+BN, no relu
    t_d = trip(y2, M02[...], ML2[...])
    h2 = jnp.maximum(mm(t_d, BD[...]) + bD[...] + res2, 0.0)

    x2 = mm(mm(PH2[...], h2), RP2[...])               # (R4, W/4*4C)

    # ---- up_2 conv at quarter res ----
    t_e = trip(x2, M04[...], ML4[...])
    u2 = mm(t_e, BE[...]) + bE[...]                   # (R4, W/4*4C)

    # ---- bottle (1x1, bias=False) commuted before the bilinear upsamples ----
    c0 = mm(x.astype(bf16), RA[...])                  # x        @ (I  (x) Wa)
    c1 = mm(U2H[...], mm(u1.astype(bf16), RUP1[...])) # up2( u1  @ (Uw (x) Wb) )
    c2 = mm(U4H[...], mm(u2.astype(bf16), RUP2[...])) # up4( u2  @ (Uw (x) Wc) )
    o_ref[...] = jnp.maximum(c0 + c1 + c2, 0.0)       # (B*H, W*Co), lane-dense f32


# --------------------------------------------------------------------------
# Wrapper: NCHW in -> fused kernel -> NCHW out
# --------------------------------------------------------------------------
def feature_block_forward(x_nchw, consts):
    N, C, H, W = x_nchw.shape
    Co = consts[18].shape[1] // W                     # RA: (W*C, W*Co)
    b_tile = consts[10].shape[1] // H                 # PH1: (B*H/2, B*H)
    assert N % b_tile == 0, (N, b_tile)
    grid = N // b_tile

    x_flat = jnp.transpose(x_nchw, (0, 2, 3, 1)).reshape(N * H, W * C)

    in_specs = ([pl.BlockSpec((b_tile * H, W * C), lambda n: (n, 0))]
                + [pl.BlockSpec(c.shape, lambda n: (0, 0)) for c in consts])
    out_specs = pl.BlockSpec((b_tile * H, W * Co), lambda n: (n, 0))
    out_shape = jax.ShapeDtypeStruct((N * H, W * Co), jnp.float32)

    flops = grid * _flops_per_block(b_tile, H, W, C, Co)
    bytes_accessed = (x_flat.size * 4 + N * H * W * Co * 4
                      + sum(c.size * c.dtype.itemsize for c in consts))

    out_flat = pl.pallas_call(
        _feature_block_kernel,
        out_shape=out_shape,
        grid=(grid,),
        in_specs=in_specs,
        out_specs=out_specs,
        compiler_params=pltpu.CompilerParams(dimension_semantics=("parallel",)),
        cost_estimate=pl.CostEstimate(flops=int(flops), transcendentals=0,
                                      bytes_accessed=int(bytes_accessed)),
    )(x_flat, *consts)
    return jnp.transpose(out_flat.reshape(N, H, W, Co), (0, 3, 1, 2))   # NCHW


# --------------------------------------------------------------------------
# Deterministic parameters (BN folded to inference-mode scale/bias)
# --------------------------------------------------------------------------
def init_params(key, C, Co):
    keys = iter(jax.random.split(key, 64))

    def conv_bn(cin, cout):
        w = 0.1 * jax.random.normal(next(keys), (3, 3, cin, cout), jnp.float32)
        gamma = 1.0 + 0.1 * jax.random.normal(next(keys), (cout,), jnp.float32)
        beta = 0.1 * jax.random.normal(next(keys), (cout,), jnp.float32)
        mean = 0.1 * jax.random.normal(next(keys), (cout,), jnp.float32)
        var = jax.random.uniform(next(keys), (cout,), jnp.float32, 0.5, 1.5)
        scale = gamma / jnp.sqrt(var + 1e-5)
        return w * scale, beta - mean * scale        # (folded weight, folded bias)

    return dict(
        d1c1=conv_bn(C, 2 * C), d1c2=conv_bn(2 * C, 2 * C), d1cd=conv_bn(C, 2 * C),
        d2c1=conv_bn(2 * C, 4 * C), d2c2=conv_bn(4 * C, 4 * C), d2cd=conv_bn(2 * C, 4 * C),
        u1=conv_bn(2 * C, 2 * C), u2=conv_bn(4 * C, 4 * C),
        # bottle 1x1 conv over concat(C + 2C + 4C) channels, split per source
        wa=0.1 * jax.random.normal(next(keys), (C, Co), jnp.float32),
        wb=0.1 * jax.random.normal(next(keys), (2 * C, Co), jnp.float32),
        wc=0.1 * jax.random.normal(next(keys), (4 * C, Co), jnp.float32),
    )


# --------------------------------------------------------------------------
# Pure-JAX f32 reference (direct port of the PyTorch forward, NHWC math)
# --------------------------------------------------------------------------
def _reference_forward(x_nchw, params):
    x = jnp.transpose(x_nchw, (0, 2, 3, 1)).astype(jnp.float32)

    def conv3x3(a, w, b):
        _, hh, ww, _ = a.shape
        ap = jnp.pad(a, ((0, 0), (1, 1), (1, 1), (0, 0)))
        out = jnp.zeros(a.shape[:3] + (w.shape[-1],), jnp.float32)
        for dy in range(3):
            for dx in range(3):
                out = out + jnp.einsum('nhwc,cf->nhwf',
                                       ap[:, dy:dy + hh, dx:dx + ww, :], w[dy, dx])
        return out + b

    def resample(a, rh, rw):
        t = jnp.einsum('ih,nhwc->niwc', jnp.asarray(rh), a)
        return jnp.einsum('jw,niwc->nijc', jnp.asarray(rw), t)

    def pool(a):
        return resample(a, _pool_matrix(a.shape[1]), _pool_matrix(a.shape[2]))

    def upsample(a, s):
        return resample(a, _bilinear_matrix(a.shape[1], s), _bilinear_matrix(a.shape[2], s))

    def basic(a, c1, c2, cd):
        res = conv3x3(a, *cd)
        y = jnp.maximum(conv3x3(a, *c1), 0.0)
        return jnp.maximum(conv3x3(y, *c2) + res, 0.0)

    h1 = basic(x, params['d1c1'], params['d1c2'], params['d1cd'])
    x1 = pool(h1)
    h2 = basic(x1, params['d2c1'], params['d2c2'], params['d2cd'])
    x2 = pool(h2)
    out_x1 = upsample(conv3x3(x1, *params['u1']), 2)
    out_x2 = upsample(conv3x3(x2, *params['u2']), 4)
    cat = jnp.concatenate([x, out_x1, out_x2], axis=-1)
    wcat = jnp.concatenate([params['wa'], params['wb'], params['wc']], axis=0)
    out = jnp.maximum(jnp.einsum('nhwc,cf->nhwf', cat, wcat), 0.0)
    return jnp.transpose(out, (0, 3, 1, 2))


# --------------------------------------------------------------------------
if __name__ == "__main__":
    key = jax.random.PRNGKey(0)
    kx, kp = jax.random.split(key)

    N, C, H, W = 2, 4, 16, 16          # FeatureBlock(in_channels=4, out_channels=8)
    OUT_C = 8

    x = jax.random.normal(kx, (N, C, H, W), jnp.float32)     # PyTorch NCHW layout
    params = init_params(kp, C, OUT_C)
    b_tile = _pick_b_tile(N, H)
    consts = pack_constants(params, H, W, C, b_tile)

    fwd = jax.jit(feature_block_forward)
    out = jax.block_until_ready(fwd(x, consts))               # (N, OUT_C, H, W)

    assert out.shape == (N, OUT_C, H, W), out.shape
    assert bool(jnp.all(jnp.isfinite(out)))

    # Validate against the f32 reference (bf16 conv matmul inputs -> relaxed tolerance).
    ref = jax.block_until_ready(_reference_forward(x, params))
    err = float(jnp.max(jnp.abs(out - ref)) / (jnp.max(jnp.abs(ref)) + 1e-6))
    assert np.isfinite(err) and err < 0.1, f"kernel/reference mismatch: {err}"

    print("KERNEL_OK")
</pallas_src>

<mosaic_0001>
module attributes {stable_mosaic.version = 11 : i64} {
  func.func @_feature_block_kernel(%arg0: i32, %arg1: memref<32x64xf32, #tpu.memory_space<vmem>>, %arg2: memref<192x256xbf16, #tpu.memory_space<vmem>>, %arg3: memref<1x256xf32, #tpu.memory_space<vmem>>, %arg4: memref<384x128xbf16, #tpu.memory_space<vmem>>, %arg5: memref<1x128xf32, #tpu.memory_space<vmem>>, %arg6: memref<192x320xbf16, #tpu.memory_space<vmem>>, %arg7: memref<1x320xf32, #tpu.memory_space<vmem>>, %arg8: memref<384x128xbf16, #tpu.memory_space<vmem>>, %arg9: memref<1x128xf32, #tpu.memory_space<vmem>>, %arg10: memref<192x64xbf16, #tpu.memory_space<vmem>>, %arg11: memref<1x64xf32, #tpu.memory_space<vmem>>, %arg12: memref<16x32xf32, #tpu.memory_space<vmem>>, %arg13: memref<128x64xf32, #tpu.memory_space<vmem>>, %arg14: memref<8x16xf32, #tpu.memory_space<vmem>>, %arg15: memref<128x64xf32, #tpu.memory_space<vmem>>, %arg16: memref<32x16xf32, #tpu.memory_space<vmem>>, %arg17: memref<64x128xbf16, #tpu.memory_space<vmem>>, %arg18: memref<32x8xf32, #tpu.memory_space<vmem>>, %arg19: memref<64x128xbf16, #tpu.memory_space<vmem>>, %arg20: memref<64x128xbf16, #tpu.memory_space<vmem>>, %arg21: memref<32x1xf32, #tpu.memory_space<vmem>>, %arg22: memref<32x1xf32, #tpu.memory_space<vmem>>, %arg23: memref<16x1xf32, #tpu.memory_space<vmem>>, %arg24: memref<16x1xf32, #tpu.memory_space<vmem>>, %arg25: memref<8x1xf32, #tpu.memory_space<vmem>>, %arg26: memref<8x1xf32, #tpu.memory_space<vmem>>, %arg27: memref<32x128xf32, #tpu.memory_space<vmem>>) attributes {dimension_semantics = [#tpu.dimension_semantics<parallel>], iteration_bounds = array<i64: 1>, scalar_prefetch = 0 : i64, scratch_operands = 0 : i64, tpu.core_type = #tpu.core_type<tc>, window_params = [{transform_indices = @transform_0, window_bounds = array<i64: 32, 64>}, {pipeline_mode = #tpu.pipeline_mode<synchronous>, transform_indices = @transform_1, window_bounds = array<i64: 192, 256>}, {pipeline_mode = #tpu.pipeline_mode<synchronous>, transform_indices = @transform_2, window_bounds = array<i64: 1, 256>}, {pipeline_mode = #tpu.pipeline_mode<synchronous>, transform_indices = @transform_3, window_bounds = array<i64: 384, 128>}, {pipeline_mode = #tpu.pipeline_mode<synchronous>, transform_indices = @transform_4, window_bounds = array<i64: 1, 128>}, {pipeline_mode = #tpu.pipeline_mode<synchronous>, transform_indices = @transform_5, window_bounds = array<i64: 192, 320>}, {pipeline_mode = #tpu.pipeline_mode<synchronous>, transform_indices = @transform_6, window_bounds = array<i64: 1, 320>}, {pipeline_mode = #tpu.pipeline_mode<synchronous>, transform_indices = @transform_7, window_bounds = array<i64: 384, 128>}, {pipeline_mode = #tpu.pipeline_mode<synchronous>, transform_indices = @transform_8, window_bounds = array<i64: 1, 128>}, {pipeline_mode = #tpu.pipeline_mode<synchronous>, transform_indices = @transform_9, window_bounds = array<i64: 192, 64>}, {pipeline_mode = #tpu.pipeline_mode<synchronous>, transform_indices = @transform_10, window_bounds = array<i64: 1, 64>}, {pipeline_mode = #tpu.pipeline_mode<synchronous>, transform_indices = @transform_11, window_bounds = array<i64: 16, 32>}, {pipeline_mode = #tpu.pipeline_mode<synchronous>, transform_indices = @transform_12, window_bounds = array<i64: 128, 64>}, {pipeline_mode = #tpu.pipeline_mode<synchronous>, transform_indices = @transform_13, window_bounds = array<i64: 8, 16>}, {pipeline_mode = #tpu.pipeline_mode<synchronous>, transform_indices = @transform_14, window_bounds = array<i64: 128, 64>}, {pipeline_mode = #tpu.pipeline_mode<synchronous>, transform_indices = @transform_15, window_bounds = array<i64: 32, 16>}, {pipeline_mode = #tpu.pipeline_mode<synchronous>, transform_indices = @transform_16, window_bounds = array<i64: 64, 128>}, {pipeline_mode = #tpu.pipeline_mode<synchronous>, transform_indices = @transform_17, window_bounds = array<i64: 32, 8>}, {pipeline_mode = #tpu.pipeline_mode<synchronous>, transform_indices = @transform_18, window_bounds = array<i64: 64, 128>}, {pipeline_mode = #tpu.pipeline_mode<synchronous>, transform_indices = @transform_19, window_bounds = array<i64: 64, 128>}, {pipeline_mode = #tpu.pipeline_mode<synchronous>, transform_indices = @transform_20, window_bounds = array<i64: 32, 1>}, {pipeline_mode = #tpu.pipeline_mode<synchronous>, transform_indices = @transform_21, window_bounds = array<i64: 32, 1>}, {pipeline_mode = #tpu.pipeline_mode<synchronous>, transform_indices = @transform_22, window_bounds = array<i64: 16, 1>}, {pipeline_mode = #tpu.pipeline_mode<synchronous>, transform_indices = @transform_23, window_bounds = array<i64: 16, 1>}, {pipeline_mode = #tpu.pipeline_mode<synchronous>, transform_indices = @transform_24, window_bounds = array<i64: 8, 1>}, {pipeline_mode = #tpu.pipeline_mode<synchronous>, transform_indices = @transform_25, window_bounds = array<i64: 8, 1>}, {transform_indices = @transform_26, window_bounds = array<i64: 32, 128>}]} {
    %c0 = arith.constant 0 : index
    %c0_0 = arith.constant 0 : index
    %0 = vector.load %arg1[%c0, %c0_0] : memref<32x64xf32, #tpu.memory_space<vmem>>, vector<32x64xf32>
    %c0_1 = arith.constant 0 : index
    %c0_2 = arith.constant 0 : index
    %1 = vector.load %arg21[%c0_1, %c0_2] : memref<32x1xf32, #tpu.memory_space<vmem>>, vector<32x1xf32>
    %c0_3 = arith.constant 0 : index
    %c0_4 = arith.constant 0 : index
    %2 = vector.load %arg22[%c0_3, %c0_4] : memref<32x1xf32, #tpu.memory_space<vmem>>, vector<32x1xf32>
    %c1_i32 = arith.constant 1 : i32
    %3 = tpu.dynamic_rotate %0 by %c1_i32 dim 0 : vector<32x64xf32>, i32 -> vector<32x64xf32>
    %4 = vector.broadcast %1 : vector<32x1xf32> to vector<32x64xf32>
    %5 = arith.mulf %3, %4 : vector<32x64xf32>
    %c31_i32 = arith.constant 31 : i32
    %6 = tpu.dynamic_rotate %0 by %c31_i32 dim 0 : vector<32x64xf32>, i32 -> vector<32x64xf32>
    %7 = vector.broadcast %2 : vector<32x1xf32> to vector<32x64xf32>
    %8 = arith.mulf %6, %7 : vector<32x64xf32>
    %9 = tpu.concatenate %5, %0, %8 in 1 : vector<32x64xf32>, vector<32x64xf32>, vector<32x64xf32> -> vector<32x192xf32>
    %10 = arith.truncf %9 : vector<32x192xf32> to vector<32x192xbf16>
    %c0_5 = arith.constant 0 : index
    %c0_6 = arith.constant 0 : index
    %11 = vector.load %arg2[%c0_5, %c0_6] : memref<192x256xbf16, #tpu.memory_space<vmem>>, vector<192x256xbf16>
    %cst = arith.constant dense<0.000000e+00> : vector<32x256xf32>
    %12 = tpu.matmul %10, %11, %cst {dimension_numbers = #tpu.dot_dimension_numbers<[1], [0], [0], [1], [0, 0, 1, 1], [], []>} : vector<32x192xbf16>, vector<192x256xbf16>, vector<32x256xf32> -> vector<32x256xf32>
    %c0_7 = arith.constant 0 : index
    %c0_8 = arith.constant 0 : index
    %13 = vector.load %arg3[%c0_7, %c0_8] : memref<1x256xf32, #tpu.memory_space<vmem>>, vector<1x256xf32>
    %14 = vector.broadcast %13 : vector<1x256xf32> to vector<32x256xf32>
    %15 = arith.addf %12, %14 : vector<32x256xf32>
    %16 = vector.extract_strided_slice %15 {offsets = [0, 0], sizes = [32, 128], strides = [1, 1]} : vector<32x256xf32> to vector<32x128xf32>
    %cst_9 = arith.constant 0.000000e+00 : f32
    %17 = vector.broadcast %cst_9 : f32 to vector<32x128xf32>
    %18 = arith.maximumf %16, %17 : vector<32x128xf32>
    %19 = vector.extract_strided_slice %15 {offsets = [0, 128], sizes = [32, 128], strides = [1, 1]} : vector<32x256xf32> to vector<32x128xf32>
    %c0_10 = arith.constant 0 : index
    %c0_11 = arith.constant 0 : index
    %20 = vector.load %arg21[%c0_10, %c0_11] : memref<32x1xf32, #tpu.memory_space<vmem>>, vector<32x1xf32>
    %c0_12 = arith.constant 0 : index
    %c0_13 = arith.constant 0 : index
    %21 = vector.load %arg22[%c0_12, %c0_13] : memref<32x1xf32, #tpu.memory_space<vmem>>, vector<32x1xf32>
    %c1_i32_14 = arith.constant 1 : i32
    %22 = tpu.dynamic_rotate %18 by %c1_i32_14 dim 0 : vector<32x128xf32>, i32 -> vector<32x128xf32>
    %23 = vector.broadcast %20 : vector<32x1xf32> to vector<32x128xf32>
    %24 = arith.mulf %22, %23 : vector<32x128xf32>
    %c31_i32_15 = arith.constant 31 : i32
    %25 = tpu.dynamic_rotate %18 by %c31_i32_15 dim 0 : vector<32x128xf32>, i32 -> vector<32x128xf32>
    %26 = vector.broadcast %21 : vector<32x1xf32> to vector<32x128xf32>
    %27 = arith.mulf %25, %26 : vector<32x128xf32>
    %28 = tpu.concatenate %24, %18, %27 in 1 : vector<32x128xf32>, vector<32x128xf32>, vector<32x128xf32> -> vector<32x384xf32>
    %29 = arith.truncf %28 : vector<32x384xf32> to vector<32x384xbf16>
    %c0_16 = arith.constant 0 : index
    %c0_17 = arith.constant 0 : index
    %30 = vector.load %arg4[%c0_16, %c0_17] : memref<384x128xbf16, #tpu.memory_space<vmem>>, vector<384x128xbf16>
    %cst_18 = arith.constant dense<0.000000e+00> : vector<32x128xf32>
    %31 = tpu.matmul %29, %30, %cst_18 {dimension_numbers = #tpu.dot_dimension_numbers<[1], [0], [0], [1], [0, 0, 1, 1], [], []>} : vector<32x384xbf16>, vector<384x128xbf16>, vector<32x128xf32> -> vector<32x128xf32>
    %c0_19 = arith.constant 0 : index
    %c0_20 = arith.constant 0 : index
    %32 = vector.load %arg5[%c0_19, %c0_20] : memref<1x128xf32, #tpu.memory_space<vmem>>, vector<1x128xf32>
    %33 = vector.broadcast %32 : vector<1x128xf32> to vector<32x128xf32>
    %34 = arith.addf %31, %33 : vector<32x128xf32>
    %35 = arith.addf %34, %19 : vector<32x128xf32>
    %cst_21 = arith.constant 0.000000e+00 : f32
    %36 = vector.broadcast %cst_21 : f32 to vector<32x128xf32>
    %37 = arith.maximumf %35, %36 : vector<32x128xf32>
    %c0_22 = arith.constant 0 : index
    %c0_23 = arith.constant 0 : index
    %38 = vector.load %arg12[%c0_22, %c0_23] : memref<16x32xf32, #tpu.memory_space<vmem>>, vector<16x32xf32>
    %cst_24 = arith.constant dense<0.000000e+00> : vector<16x128xf32>
    %39 = tpu.matmul %38, %37, %cst_24 {dimension_numbers = #tpu.dot_dimension_numbers<[1], [0], [0], [1], [0, 0, 1, 1], [], []>} : vector<16x32xf32>, vector<32x128xf32>, vector<16x128xf32> -> vector<16x128xf32>
    %c0_25 = arith.constant 0 : index
    %c0_26 = arith.constant 0 : index
    %40 = vector.load %arg13[%c0_25, %c0_26] : memref<128x64xf32, #tpu.memory_space<vmem>>, vector<128x64xf32>
    %cst_27 = arith.constant dense<0.000000e+00> : vector<16x64xf32>
    %41 = tpu.matmul %39, %40, %cst_27 {dimension_numbers = #tpu.dot_dimension_numbers<[1], [0], [0], [1], [0, 0, 1, 1], [], []>} : vector<16x128xf32>, vector<128x64xf32>, vector<16x64xf32> -> vector<16x64xf32>
    %c0_28 = arith.constant 0 : index
    %c0_29 = arith.constant 0 : index
    %42 = vector.load %arg23[%c0_28, %c0_29] : memref<16x1xf32, #tpu.memory_space<vmem>>, vector<16x1xf32>
    %c0_30 = arith.constant 0 : index
    %c0_31 = arith.constant 0 : index
    %43 = vector.load %arg24[%c0_30, %c0_31] : memref<16x1xf32, #tpu.memory_space<vmem>>, vector<16x1xf32>
    %c1_i32_32 = arith.constant 1 : i32
    %44 = tpu.dynamic_rotate %41 by %c1_i32_32 dim 0 : vector<16x64xf32>, i32 -> vector<16x64xf32>
    %45 = vector.broadcast %42 : vector<16x1xf32> to vector<16x64xf32>
    %46 = arith.mulf %44, %45 : vector<16x64xf32>
    %c15_i32 = arith.constant 15 : i32
    %47 = tpu.dynamic_rotate %41 by %c15_i32 dim 0 : vector<16x64xf32>, i32 -> vector<16x64xf32>
    %48 = vector.broadcast %43 : vector<16x1xf32> to vector<16x64xf32>
    %49 = arith.mulf %47, %48 : vector<16x64xf32>
    %50 = tpu.concatenate %46, %41, %49 in 1 : vector<16x64xf32>, vector<16x64xf32>, vector<16x64xf32> -> vector<16x192xf32>
    %51 = arith.truncf %50 : vector<16x192xf32> to vector<16x192xbf16>
    %c0_33 = arith.constant 0 : index
    %c0_34 = arith.constant 0 : index
    %52 = vector.load %arg6[%c0_33, %c0_34] : memref<192x320xbf16, #tpu.memory_space<vmem>>, vector<192x320xbf16>
    %cst_35 = arith.constant dense<0.000000e+00> : vector<16x320xf32>
    %53 = tpu.matmul %51, %52, %cst_35 {dimension_numbers = #tpu.dot_dimension_numbers<[1], [0], [0], [1], [0, 0, 1, 1], [], []>} : vector<16x192xbf16>, vector<192x320xbf16>, vector<16x320xf32> -> vector<16x320xf32>
    %c0_36 = arith.constant 0 : index
    %c0_37 = arith.constant 0 : index
    %54 = vector.load %arg7[%c0_36, %c0_37] : memref<1x320xf32, #tpu.memory_space<vmem>>, vector<1x320xf32>
    %55 = vector.broadcast %54 : vector<1x320xf32> to vector<16x320xf32>
    %56 = arith.addf %53, %55 : vector<16x320xf32>
    %57 = vector.extract_strided_slice %56 {offsets = [0, 0], sizes = [16, 128], strides = [1, 1]} : vector<16x320xf32> to vector<16x128xf32>
    %cst_38 = arith.constant 0.000000e+00 : f32
    %58 = vector.broadcast %cst_38 : f32 to vector<16x128xf32>
    %59 = arith.maximumf %57, %58 : vector<16x128xf32>
    %60 = vector.extract_strided_slice %56 {offsets = [0, 128], sizes = [16, 128], strides = [1, 1]} : vector<16x320xf32> to vector<16x128xf32>
    %61 = vector.extract_strided_slice %56 {offsets = [0, 256], sizes = [16, 64], strides = [1, 1]} : vector<16x320xf32> to vector<16x64xf32>
    %c0_39 = arith.constant 0 : index
    %c0_40 = arith.constant 0 : index
    %62 = vector.load %arg23[%c0_39, %c0_40] : memref<16x1xf32, #tpu.memory_space<vmem>>, vector<16x1xf32>
    %c0_41 = arith.constant 0 : index
    %c0_42 = arith.constant 0 : index
    %63 = vector.load %arg24[%c0_41, %c0_42] : memref<16x1xf32, #tpu.memory_space<vmem>>, vector<16x1xf32>
    %c1_i32_43 = arith.constant 1 : i32
    %64 = tpu.dynamic_rotate %59 by %c1_i32_43 dim 0 : vector<16x128xf32>, i32 -> vector<16x128xf32>
    %65 = vector.broadcast %62 : vector<16x1xf32> to vector<16x128xf32>
    %66 = arith.mulf %64, %65 : vector<16x128xf32>
    %c15_i32_44 = arith.constant 15 : i32
    %67 = tpu.dynamic_rotate %59 by %c15_i32_44 dim 0 : vector<16x128xf32>, i32 -> vector<16x128xf32>
    %68 = vector.broadcast %63 : vector<16x1xf32> to vector<16x128xf32>
    %69 = arith.mulf %67, %68 : vector<16x128xf32>
    %70 = tpu.concatenate %66, %59, %69 in 1 : vector<16x128xf32>, vector<16x128xf32>, vector<16x128xf32> -> vector<16x384xf32>
    %71 = arith.truncf %70 : vector<16x384xf32> to vector<16x384xbf16>
    %c0_45 = arith.constant 0 : index
    %c0_46 = arith.constant 0 : index
    %72 = vector.load %arg8[%c0_45, %c0_46] : memref<384x128xbf16, #tpu.memory_space<vmem>>, vector<384x128xbf16>
    %cst_47 = arith.constant dense<0.000000e+00> : vector<16x128xf32>
    %73 = tpu.matmul %71, %72, %cst_47 {dimension_numbers = #tpu.dot_dimension_numbers<[1], [0], [0], [1], [0, 0, 1, 1], [], []>} : vector<16x384xbf16>, vector<384x128xbf16>, vector<16x128xf32> -> vector<16x128xf32>
    %c0_48 = arith.constant 0 : index
    %c0_49 = arith.constant 0 : index
    %74 = vector.load %arg9[%c0_48, %c0_49] : memref<1x128xf32, #tpu.memory_space<vmem>>, vector<1x128xf32>
    %75 = vector.broadcast %74 : vector<1x128xf32> to vector<16x128xf32>
    %76 = arith.addf %73, %75 : vector<16x128xf32>
    %77 = arith.addf %76, %60 : vector<16x128xf32>
    %cst_50 = arith.constant 0.000000e+00 : f32
    %78 = vector.broadcast %cst_50 : f32 to vector<16x128xf32>
    %79 = arith.maximumf %77, %78 : vector<16x128xf32>
    %c0_51 = arith.constant 0 : index
    %c0_52 = arith.constant 0 : index
    %80 = vector.load %arg14[%c0_51, %c0_52] : memref<8x16xf32, #tpu.memory_space<vmem>>, vector<8x16xf32>
    %cst_53 = arith.constant dense<0.000000e+00> : vector<8x128xf32>
    %81 = tpu.matmul %80, %79, %cst_53 {dimension_numbers = #tpu.dot_dimension_numbers<[1], [0], [0], [1], [0, 0, 1, 1], [], []>} : vector<8x16xf32>, vector<16x128xf32>, vector<8x128xf32> -> vector<8x128xf32>
    %c0_54 = arith.constant 0 : index
    %c0_55 = arith.constant 0 : index
    %82 = vector.load %arg15[%c0_54, %c0_55] : memref<128x64xf32, #tpu.memory_space<vmem>>, vector<128x64xf32>
    %cst_56 = arith.constant dense<0.000000e+00> : vector<8x64xf32>
    %83 = tpu.matmul %81, %82, %cst_56 {dimension_numbers = #tpu.dot_dimension_numbers<[1], [0], [0], [1], [0, 0, 1, 1], [], []>} : vector<8x128xf32>, vector<128x64xf32>, vector<8x64xf32> -> vector<8x64xf32>
    %c0_57 = arith.constant 0 : index
    %c0_58 = arith.constant 0 : index
    %84 = vector.load %arg25[%c0_57, %c0_58] : memref<8x1xf32, #tpu.memory_space<vmem>>, vector<8x1xf32>
    %c0_59 = arith.constant 0 : index
    %c0_60 = arith.constant 0 : index
    %85 = vector.load %arg26[%c0_59, %c0_60] : memref<8x1xf32, #tpu.memory_space<vmem>>, vector<8x1xf32>
    %c1_i32_61 = arith.constant 1 : i32
    %86 = tpu.dynamic_rotate %83 by %c1_i32_61 dim 0 : vector<8x64xf32>, i32 -> vector<8x64xf32>
    %87 = vector.broadcast %84 : vector<8x1xf32> to vector<8x64xf32>
    %88 = arith.mulf %86, %87 : vector<8x64xf32>
    %c7_i32 = arith.constant 7 : i32
    %89 = tpu.dynamic_rotate %83 by %c7_i32 dim 0 : vector<8x64xf32>, i32 -> vector<8x64xf32>
    %90 = vector.broadcast %85 : vector<8x1xf32> to vector<8x64xf32>
    %91 = arith.mulf %89, %90 : vector<8x64xf32>
    %92 = tpu.concatenate %88, %83, %91 in 1 : vector<8x64xf32>, vector<8x64xf32>, vector<8x64xf32> -> vector<8x192xf32>
    %93 = arith.truncf %92 : vector<8x192xf32> to vector<8x192xbf16>
    %c0_62 = arith.constant 0 : index
    %c0_63 = arith.constant 0 : index
    %94 = vector.load %arg10[%c0_62, %c0_63] : memref<192x64xbf16, #tpu.memory_space<vmem>>, vector<192x64xbf16>
    %cst_64 = arith.constant dense<0.000000e+00> : vector<8x64xf32>
    %95 = tpu.matmul %93, %94, %cst_64 {dimension_numbers = #tpu.dot_dimension_numbers<[1], [0], [0], [1], [0, 0, 1, 1], [], []>} : vector<8x192xbf16>, vector<192x64xbf16>, vector<8x64xf32> -> vector<8x64xf32>
    %c0_65 = arith.constant 0 : index
    %c0_66 = arith.constant 0 : index
    %96 = vector.load %arg11[%c0_65, %c0_66] : memref<1x64xf32, #tpu.memory_space<vmem>>, vector<1x64xf32>
    %97 = vector.broadcast %96 : vector<1x64xf32> to vector<8x64xf32>
    %98 = arith.addf %95, %97 : vector<8x64xf32>
    %99 = arith.truncf %0 : vector<32x64xf32> to vector<32x64xbf16>
    %c0_67 = arith.constant 0 : index
    %c0_68 = arith.constant 0 : index
    %100 = vector.load %arg20[%c0_67, %c0_68] : memref<64x128xbf16, #tpu.memory_space<vmem>>, vector<64x128xbf16>
    %cst_69 = arith.constant dense<0.000000e+00> : vector<32x128xf32>
    %101 = tpu.matmul %99, %100, %cst_69 {dimension_numbers = #tpu.dot_dimension_numbers<[1], [0], [0], [1], [0, 0, 1, 1], [], []>} : vector<32x64xbf16>, vector<64x128xbf16>, vector<32x128xf32> -> vector<32x128xf32>
    %c0_70 = arith.constant 0 : index
    %c0_71 = arith.constant 0 : index
    %102 = vector.load %arg16[%c0_70, %c0_71] : memref<32x16xf32, #tpu.memory_space<vmem>>, vector<32x16xf32>
    %103 = arith.truncf %61 : vector<16x64xf32> to vector<16x64xbf16>
    %c0_72 = arith.constant 0 : index
    %c0_73 = arith.constant 0 : index
    %104 = vector.load %arg17[%c0_72, %c0_73] : memref<64x128xbf16, #tpu.memory_space<vmem>>, vector<64x128xbf16>
    %cst_74 = arith.constant dense<0.000000e+00> : vector<16x128xf32>
    %105 = tpu.matmul %103, %104, %cst_74 {dimension_numbers = #tpu.dot_dimension_numbers<[1], [0], [0], [1], [0, 0, 1, 1], [], []>} : vector<16x64xbf16>, vector<64x128xbf16>, vector<16x128xf32> -> vector<16x128xf32>
    %cst_75 = arith.constant dense<0.000000e+00> : vector<32x128xf32>
    %106 = tpu.matmul %102, %105, %cst_75 {dimension_numbers = #tpu.dot_dimension_numbers<[1], [0], [0], [1], [0, 0, 1, 1], [], []>} : vector<32x16xf32>, vector<16x128xf32>, vector<32x128xf32> -> vector<32x128xf32>
    %c0_76 = arith.constant 0 : index
    %c0_77 = arith.constant 0 : index
    %107 = vector.load %arg18[%c0_76, %c0_77] : memref<32x8xf32, #tpu.memory_space<vmem>>, vector<32x8xf32>
    %108 = arith.truncf %98 : vector<8x64xf32> to vector<8x64xbf16>
    %c0_78 = arith.constant 0 : index
    %c0_79 = arith.constant 0 : index
    %109 = vector.load %arg19[%c0_78, %c0_79] : memref<64x128xbf16, #tpu.memory_space<vmem>>, vector<64x128xbf16>
    %cst_80 = arith.constant dense<0.000000e+00> : vector<8x128xf32>
    %110 = tpu.matmul %108, %109, %cst_80 {dimension_numbers = #tpu.dot_dimension_numbers<[1], [0], [0], [1], [0, 0, 1, 1], [], []>} : vector<8x64xbf16>, vector<64x128xbf16>, vector<8x128xf32> -> vector<8x128xf32>
    %cst_81 = arith.constant dense<0.000000e+00> : vector<32x128xf32>
    %111 = tpu.matmul %107, %110, %cst_81 {dimension_numbers = #tpu.dot_dimension_numbers<[1], [0], [0], [1], [0, 0, 1, 1], [], []>} : vector<32x8xf32>, vector<8x128xf32>, vector<32x128xf32> -> vector<32x128xf32>
    %112 = arith.addf %101, %106 : vector<32x128xf32>
    %113 = arith.addf %112, %111 : vector<32x128xf32>
    %cst_82 = arith.constant 0.000000e+00 : f32
    %114 = vector.broadcast %cst_82 : f32 to vector<32x128xf32>
    %115 = arith.maximumf %113, %114 : vector<32x128xf32>
    %c0_83 = arith.constant 0 : index
    %c0_84 = arith.constant 0 : index
    %116 = vector.load %arg27[%c0_83, %c0_84] : memref<32x128xf32, #tpu.memory_space<vmem>>, vector<32x128xf32>
    tpu.vector_store %arg27[%c0_83, %c0_84], %115 {strides = array<i32>} : memref<32x128xf32, #tpu.memory_space<vmem>>, vector<32x128xf32>,
    return
  }
  func.func @transform_0(%arg0: i32) -> (i32, i32) {
    %c0_i32 = arith.constant 0 : i32
    %c0_i32_0 = arith.constant 0 : i32
    return %arg0, %c0_i32 : i32, i32
  }
  func.func @transform_1(%arg0: i32) -> (i32, i32) {
    %c0_i32 = arith.constant 0 : i32
    %c0_i32_0 = arith.constant 0 : i32
    %c0_i32_1 = arith.constant 0 : i32
    return %c0_i32, %c0_i32_0 : i32, i32
  }
  func.func @transform_2(%arg0: i32) -> (i32, i32) {
    %c0_i32 = arith.constant 0 : i32
    %c0_i32_0 = arith.constant 0 : i32
    %c0_i32_1 = arith.constant 0 : i32
    return %c0_i32, %c0_i32_0 : i32, i32
  }
  func.func @transform_3(%arg0: i32) -> (i32, i32) {
    %c0_i32 = arith.constant 0 : i32
    %c0_i32_0 = arith.constant 0 : i32
    %c0_i32_1 = arith.constant 0 : i32
    return %c0_i32, %c0_i32_0 : i32, i32
  }
  func.func @transform_4(%arg0: i32) -> (i32, i32) {
    %c0_i32 = arith.constant 0 : i32
    %c0_i32_0 = arith.constant 0 : i32
    %c0_i32_1 = arith.constant 0 : i32
    return %c0_i32, %c0_i32_0 : i32, i32
  }
  func.func @transform_5(%arg0: i32) -> (i32, i32) {
    %c0_i32 = arith.constant 0 : i32
    %c0_i32_0 = arith.constant 0 : i32
    %c0_i32_1 = arith.constant 0 : i32
    return %c0_i32, %c0_i32_0 : i32, i32
  }
  func.func @transform_6(%arg0: i32) -> (i32, i32) {
    %c0_i32 = arith.constant 0 : i32
    %c0_i32_0 = arith.constant 0 : i32
    %c0_i32_1 = arith.constant 0 : i32
    return %c0_i32, %c0_i32_0 : i32, i32
  }
  func.func @transform_7(%arg0: i32) -> (i32, i32) {
    %c0_i32 = arith.constant 0 : i32
    %c0_i32_0 = arith.constant 0 : i32
    %c0_i32_1 = arith.constant 0 : i32
    return %c0_i32, %c0_i32_0 : i32, i32
  }
  func.func @transform_8(%arg0: i32) -> (i32, i32) {
    %c0_i32 = arith.constant 0 : i32
    %c0_i32_0 = arith.constant 0 : i32
    %c0_i32_1 = arith.constant 0 : i32
    return %c0_i32, %c0_i32_0 : i32, i32
  }
  func.func @transform_9(%arg0: i32) -> (i32, i32) {
    %c0_i32 = arith.constant 0 : i32
    %c0_i32_0 = arith.constant 0 : i32
    %c0_i32_1 = arith.constant 0 : i32
    return %c0_i32, %c0_i32_0 : i32, i32
  }
  func.func @transform_10(%arg0: i32) -> (i32, i32) {
    %c0_i32 = arith.constant 0 : i32
    %c0_i32_0 = arith.constant 0 : i32
    %c0_i32_1 = arith.constant 0 : i32
    return %c0_i32, %c0_i32_0 : i32, i32
  }
  func.func @transform_11(%arg0: i32) -> (i32, i32) {
    %c0_i32 = arith.constant 0 : i32
    %c0_i32_0 = arith.constant 0 : i32
    %c0_i32_1 = arith.constant 0 : i32
    return %c0_i32, %c0_i32_0 : i32, i32
  }
  func.func @transform_12(%arg0: i32) -> (i32, i32) {
    %c0_i32 = arith.constant 0 : i32
    %c0_i32_0 = arith.constant 0 : i32
    %c0_i32_1 = arith.constant 0 : i32
    return %c0_i32, %c0_i32_0 : i32, i32
  }
  func.func @transform_13(%arg0: i32) -> (i32, i32) {
    %c0_i32 = arith.constant 0 : i32
    %c0_i32_0 = arith.constant 0 : i32
    %c0_i32_1 = arith.constant 0 : i32
    return %c0_i32, %c0_i32_0 : i32, i32
  }
  func.func @transform_14(%arg0: i32) -> (i32, i32) {
    %c0_i32 = arith.constant 0 : i32
    %c0_i32_0 = arith.constant 0 : i32
    %c0_i32_1 = arith.constant 0 : i32
    return %c0_i32, %c0_i32_0 : i32, i32
  }
  func.func @transform_15(%arg0: i32) -> (i32, i32) {
    %c0_i32 = arith.constant 0 : i32
    %c0_i32_0 = arith.constant 0 : i32
    %c0_i32_1 = arith.constant 0 : i32
    return %c0_i32, %c0_i32_0 : i32, i32
  }
  func.func @transform_16(%arg0: i32) -> (i32, i32) {
    %c0_i32 = arith.constant 0 : i32
    %c0_i32_0 = arith.constant 0 : i32
    %c0_i32_1 = arith.constant 0 : i32
    return %c0_i32, %c0_i32_0 : i32, i32
  }
  func.func @transform_17(%arg0: i32) -> (i32, i32) {
    %c0_i32 = arith.constant 0 : i32
    %c0_i32_0 = arith.constant 0 : i32
    %c0_i32_1 = arith.constant 0 : i32
    return %c0_i32, %c0_i32_0 : i32, i32
  }
  func.func @transform_18(%arg0: i32) -> (i32, i32) {
    %c0_i32 = arith.constant 0 : i32
    %c0_i32_0 = arith.constant 0 : i32
    %c0_i32_1 = arith.constant 0 : i32
    return %c0_i32, %c0_i32_0 : i32, i32
  }
  func.func @transform_19(%arg0: i32) -> (i32, i32) {
    %c0_i32 = arith.constant 0 : i32
    %c0_i32_0 = arith.constant 0 : i32
    %c0_i32_1 = arith.constant 0 : i32
    return %c0_i32, %c0_i32_0 : i32, i32
  }
  func.func @transform_20(%arg0: i32) -> (i32, i32) {
    %c0_i32 = arith.constant 0 : i32
    %c0_i32_0 = arith.constant 0 : i32
    %c0_i32_1 = arith.constant 0 : i32
    return %c0_i32, %c0_i32_0 : i32, i32
  }
  func.func @transform_21(%arg0: i32) -> (i32, i32) {
    %c0_i32 = arith.constant 0 : i32
    %c0_i32_0 = arith.constant 0 : i32
    %c0_i32_1 = arith.constant 0 : i32
    return %c0_i32, %c0_i32_0 : i32, i32
  }
  func.func @transform_22(%arg0: i32) -> (i32, i32) {
    %c0_i32 = arith.constant 0 : i32
    %c0_i32_0 = arith.constant 0 : i32
    %c0_i32_1 = arith.constant 0 : i32
    return %c0_i32, %c0_i32_0 : i32, i32
  }
  func.func @transform_23(%arg0: i32) -> (i32, i32) {
    %c0_i32 = arith.constant 0 : i32
    %c0_i32_0 = arith.constant 0 : i32
    %c0_i32_1 = arith.constant 0 : i32
    return %c0_i32, %c0_i32_0 : i32, i32
  }
  func.func @transform_24(%arg0: i32) -> (i32, i32) {
    %c0_i32 = arith.constant 0 : i32
    %c0_i32_0 = arith.constant 0 : i32
    %c0_i32_1 = arith.constant 0 : i32
    return %c0_i32, %c0_i32_0 : i32, i32
  }
  func.func @transform_25(%arg0: i32) -> (i32, i32) {
    %c0_i32 = arith.constant 0 : i32
    %c0_i32_0 = arith.constant 0 : i32
    %c0_i32_1 = arith.constant 0 : i32
    return %c0_i32, %c0_i32_0 : i32, i32
  }
  func.func @transform_26(%arg0: i32) -> (i32, i32) {
    %c0_i32 = arith.constant 0 : i32
    %c0_i32_0 = arith.constant 0 : i32
    return %arg0, %c0_i32 : i32, i32
  }
}

</mosaic_0001>

<llo_original>
// kernel: feature_block_forward.1
$region0: #{feature_block_forward.1}
  #allocation0 [shape = 'u32[]', space=smem, size = 0x4, offset = 0x4, fixed_abs, tag = 'smem constant byte address 0x4 - core index']
  #allocation1 [shape = 'u32[72,128]{1,0:T(1,128)}', space=vmem, size = 0x9000, scoped, tag = 'internal scratch']
  %s0 = inlined_call_operand.vmem [shape: f32[32,64], index: 0, kind: input, shape index: {}]
  %s1 = inlined_call_operand.vmem [shape: bf16[192,256], index: 1, kind: input, shape index: {}]
  %s2 = inlined_call_operand.hbm [shape: f32[1,256], index: 2, kind: input, shape index: {}]
  %s3 = inlined_call_operand.vmem [shape: bf16[384,128], index: 3, kind: input, shape index: {}]
  %s4 = inlined_call_operand.hbm [shape: f32[1,128], index: 4, kind: input, shape index: {}]
  %s5 = inlined_call_operand.vmem [shape: bf16[192,320], index: 5, kind: input, shape index: {}]
  %s6 = inlined_call_operand.hbm [shape: f32[1,320], index: 6, kind: input, shape index: {}]
  %s7 = inlined_call_operand.vmem [shape: bf16[384,128], index: 7, kind: input, shape index: {}]
  %s8 = inlined_call_operand.hbm [shape: f32[1,128], index: 8, kind: input, shape index: {}]
  %s9 = inlined_call_operand.vmem [shape: bf16[192,64], index: 9, kind: input, shape index: {}]
  %s10 = inlined_call_operand.hbm [shape: f32[1,64], index: 10, kind: input, shape index: {}]
  %s11 = inlined_call_operand.hbm [shape: f32[16,32], index: 11, kind: input, shape index: {}]
  %s12 = inlined_call_operand.vmem [shape: f32[128,64], index: 12, kind: input, shape index: {}]
  %s13 = inlined_call_operand.hbm [shape: f32[8,16], index: 13, kind: input, shape index: {}]
  %s14 = inlined_call_operand.vmem [shape: f32[128,64], index: 14, kind: input, shape index: {}]
  %s15 = inlined_call_operand.vmem [shape: f32[32,16], index: 15, kind: input, shape index: {}]
  %s16 = inlined_call_operand.vmem [shape: bf16[64,128], index: 16, kind: input, shape index: {}]
  %s17 = inlined_call_operand.vmem [shape: f32[32,8], index: 17, kind: input, shape index: {}]
  %s18 = inlined_call_operand.vmem [shape: bf16[64,128], index: 18, kind: input, shape index: {}]
  %s19 = inlined_call_operand.vmem [shape: bf16[64,128], index: 19, kind: input, shape index: {}]
  %s20 = inlined_call_operand.vmem [shape: f32[32,1], index: 20, kind: input, shape index: {}]
  %s21 = inlined_call_operand.vmem [shape: f32[32,1], index: 21, kind: input, shape index: {}]
  %s22 = inlined_call_operand.vmem [shape: f32[16,1], index: 22, kind: input, shape index: {}]
  %s23 = inlined_call_operand.vmem [shape: f32[16,1], index: 23, kind: input, shape index: {}]
  %s24 = inlined_call_operand.vmem [shape: f32[8,1], index: 24, kind: input, shape index: {}]
  %s25 = inlined_call_operand.vmem [shape: f32[8,1], index: 25, kind: input, shape index: {}]
  %s26 = inlined_call_operand.vmem [shape: f32[32,128], index: 26, kind: output, shape index: {}]
  %s27 = sld [smem:[#allocation0]]
  $region142: #{feature_block_forward.1} parent=0
    _
  %s29 = ssub.s32 1, %s27
  %s30 = scalar_select 0, %s29, %s27
  $region1: #{feature_block_forward.1} parent=0
    #allocation2 [shape = 'u8[1024]{0}', space=vmem, size = 0x400, scoped, tag = 'input window, operand 2, single buffered']
    #allocation3 [shape = 's32[1]{0}', space=sflag, size = 0x4, scoped, tag = 'scoped memory for feature_block_forward.1']
    #allocation4 [shape = 'u8[512]{0}', space=vmem, size = 0x400, scoped, tag = 'input window, operand 4, single buffered']
    #allocation5 [shape = 's32[1]{0}', space=sflag, size = 0x4, scoped, tag = 'scoped memory for feature_block_forward.1']
    #allocation6 [shape = 'u8[1536]{0}', space=vmem, size = 0x800, scoped, tag = 'input window, operand 6, single buffered']
    #allocation7 [shape = 'u8[512]{0}', space=vmem, size = 0x400, scoped, tag = 'input window, operand 8, single buffered']
    #allocation8 [shape = 's32[1]{0}', space=sflag, size = 0x4, scoped, tag = 'scoped memory for feature_block_forward.1']
    #allocation9 [shape = 'u8[512]{0}', space=vmem, size = 0x400, scoped, tag = 'input window, operand 10, single buffered']
    #allocation10 [shape = 'u8[8192]{0}', space=vmem, size = 0x2000, scoped, tag = 'input window, operand 11, single buffered']
    #allocation11 [shape = 's32[1]{0}', space=sflag, size = 0x4, scoped, tag = 'scoped memory for feature_block_forward.1']
    #allocation12 [shape = 'u8[4096]{0}', space=vmem, size = 0x1000, scoped, tag = 'input window, operand 13, single buffered']
    %31 = vsyncpa [#allocation3], 0
    %32 = vsyncpa [#allocation5], 0
    %33 = vsyncpa [#allocation8], 0
    %34 = vsyncpa [#allocation11], 0
    // Predicated region
    $region2: #{feature_block_forward.1} parent=1 // pred_check
      _
    $region3: #{feature_block_forward.1} parent=1 // pred_check_branch
      %36 = sbr.rel (0) target = $region5
    $region4: #{feature_block_forward.1} parent=1 // pred_region
      _
    $region5: #{feature_block_forward.1} parent=1 // pred_fallthru
      _
    // Predicated region
    $region6: #{feature_block_forward.1} parent=1 // pred_check
      _
    $region7: #{feature_block_forward.1} parent=1 // pred_check_branch
      %38 = sbr.rel (0) target = $region9
    $region8: #{feature_block_forward.1} parent=1 // pred_region
      _
    $region9: #{feature_block_forward.1} parent=1 // pred_fallthru
      _
    // Predicated region
    $region10: #{feature_block_forward.1} parent=1 // pred_check
      _
    $region11: #{feature_block_forward.1} parent=1 // pred_check_branch
      %40 = sbr.rel (0) target = $region13
    $region12: #{feature_block_forward.1} parent=1 // pred_region
      %42 = vsyncadd [#allocation3], 0
      %s44 = sshll.u32 %s2, 4
      %s45 = int_to_ptr.hbm [resolvable:$true] %s44
      %s46 = sshll.u32 [#allocation2], 4
      %s47 = int_to_ptr.vmem [resolvable:$true] %s46
      %49 = dma.hbm_to_vmem [thread:$0]  %s45, 32, %s47, [#allocation3]
    $region13: #{feature_block_forward.1} parent=1 // pred_fallthru
      _
    // Predicated region
    $region14: #{feature_block_forward.1} parent=1 // pred_check
      _
    $region15: #{feature_block_forward.1} parent=1 // pred_check_branch
      %51 = sbr.rel (0) target = $region17
    $region16: #{feature_block_forward.1} parent=1 // pred_region
      _
    $region17: #{feature_block_forward.1} parent=1 // pred_fallthru
      _
    // Predicated region
    $region18: #{feature_block_forward.1} parent=1 // pred_check
      _
    $region19: #{feature_block_forward.1} parent=1 // pred_check_branch
      %53 = sbr.rel (0) target = $region21
    $region20: #{feature_block_forward.1} parent=1 // pred_region
      %55 = vsyncadd [#allocation5], 0
      %s57 = sshll.u32 %s4, 4
      %s58 = int_to_ptr.hbm [resolvable:$true] %s57
      %s59 = sshll.u32 [#allocation4], 4
      %s60 = int_to_ptr.vmem [resolvable:$true] %s59
      %62 = dma.hbm_to_vmem [thread:$0]  %s58, 16, %s60, [#allocation5]
    $region21: #{feature_block_forward.1} parent=1 // pred_fallthru
      _
    // Predicated region
    $region22: #{feature_block_forward.1} parent=1 // pred_check
      _
    $region23: #{feature_block_forward.1} parent=1 // pred_check_branch
      %64 = sbr.rel (0) target = $region25
    $region24: #{feature_block_forward.1} parent=1 // pred_region
      _
    $region25: #{feature_block_forward.1} parent=1 // pred_fallthru
      _
    // Predicated region
    $region26: #{feature_block_forward.1} parent=1 // pred_check
      _
    $region27: #{feature_block_forward.1} parent=1 // pred_check_branch
      %66 = sbr.rel (0) target = $region29
    $region28: #{feature_block_forward.1} parent=1 // pred_region
      %68 = vsyncadd [#allocation5], 0
      %s70 = sshll.u32 %s6, 4
      %s71 = int_to_ptr.hbm [resolvable:$true] %s70
      %s72 = sshll.u32 [#allocation6], 4
      %s73 = int_to_ptr.vmem [resolvable:$true] %s72
      %75 = dma.hbm_to_vmem [thread:$0]  %s71, 48, %s73, [#allocation5]
    $region29: #{feature_block_forward.1} parent=1 // pred_fallthru
      _
    // Predicated region
    $region30: #{feature_block_forward.1} parent=1 // pred_check
      _
    $region31: #{feature_block_forward.1} parent=1 // pred_check_branch
      %77 = sbr.rel (0) target = $region33
    $region32: #{feature_block_forward.1} parent=1 // pred_region
      _
    $region33: #{feature_block_forward.1} parent=1 // pred_fallthru
      _
    // Predicated region
    $region34: #{feature_block_forward.1} parent=1 // pred_check
      _
    $region35: #{feature_block_forward.1} parent=1 // pred_check_branch
      %79 = sbr.rel (0) target = $region37
    $region36: #{feature_block_forward.1} parent=1 // pred_region
      %81 = vsyncadd [#allocation8], 0
      %s83 = sshll.u32 %s8, 4
      %s84 = int_to_ptr.hbm [resolvable:$true] %s83
      %s85 = sshll.u32 [#allocation7], 4
      %s86 = int_to_ptr.vmem [resolvable:$true] %s85
      %88 = dma.hbm_to_vmem [thread:$0]  %s84, 16, %s86, [#allocation8]
    $region37: #{feature_block_forward.1} parent=1 // pred_fallthru
      _
    // Predicated region
    $region38: #{feature_block_forward.1} parent=1 // pred_check
      _
    $region39: #{feature_block_forward.1} parent=1 // pred_check_branch
      %90 = sbr.rel (0) target = $region41
    $region40: #{feature_block_forward.1} parent=1 // pred_region
      _
    $region41: #{feature_block_forward.1} parent=1 // pred_fallthru
      _
    // Predicated region
    $region42: #{feature_block_forward.1} parent=1 // pred_check
      _
    $region43: #{feature_block_forward.1} parent=1 // pred_check_branch
      %92 = sbr.rel (0) target = $region45
    $region44: #{feature_block_forward.1} parent=1 // pred_region
      %94 = vsyncadd [#allocation8], 0
      %s96 = sshll.u32 %s10, 4
      %s97 = int_to_ptr.hbm [resolvable:$true] %s96
      %s98 = sshll.u32 [#allocation9], 4
      %s99 = int_to_ptr.vmem [resolvable:$true] %s98
      %101 = dma.hbm_to_vmem [thread:$0]  %s97, 16, %s99, [#allocation8]
    $region45: #{feature_block_forward.1} parent=1 // pred_fallthru
      _
    // Predicated region
    $region46: #{feature_block_forward.1} parent=1 // pred_check
      _
    $region47: #{feature_block_forward.1} parent=1 // pred_check_branch
      %103 = sbr.rel (0) target = $region49
    $region48: #{feature_block_forward.1} parent=1 // pred_region
      %105 = vsyncadd [#allocation11], 0
      %s106 = sshll.u32 %s11, 4
      %s107 = int_to_ptr.hbm [resolvable:$true] %s106
      %s108 = sshll.u32 [#allocation10], 4
      %s109 = int_to_ptr.vmem [resolvable:$true] %s108
      %114 = dma.hbm_to_vmem [thread:$0]  %s107, 256, %s109, [#allocation11], 128, 128, 8
    $region49: #{feature_block_forward.1} parent=1 // pred_fallthru
      _
    // Predicated region
    $region50: #{feature_block_forward.1} parent=1 // pred_check
      _
    $region51: #{feature_block_forward.1} parent=1 // pred_check_branch
      %116 = sbr.rel (0) target = $region53
    $region52: #{feature_block_forward.1} parent=1 // pred_region
      _
    $region53: #{feature_block_forward.1} parent=1 // pred_fallthru
      _
    // Predicated region
    $region54: #{feature_block_forward.1} parent=1 // pred_check
      _
    $region55: #{feature_block_forward.1} parent=1 // pred_check_branch
      %118 = sbr.rel (0) target = $region57
    $region56: #{feature_block_forward.1} parent=1 // pred_region
      %120 = vsyncadd [#allocation11], 0
      %s122 = sshll.u32 %s13, 4
      %s123 = int_to_ptr.hbm [resolvable:$true] %s122
      %s124 = sshll.u32 [#allocation12], 4
      %s125 = int_to_ptr.vmem [resolvable:$true] %s124
      %127 = dma.hbm_to_vmem [thread:$0]  %s123, 128, %s125, [#allocation11]
    $region57: #{feature_block_forward.1} parent=1 // pred_fallthru
      _
    // Predicated region
    $region58: #{feature_block_forward.1} parent=1 // pred_check
      _
    $region59: #{feature_block_forward.1} parent=1 // pred_check_branch
      %129 = sbr.rel (0) target = $region61
    $region60: #{feature_block_forward.1} parent=1 // pred_region
      _
    $region61: #{feature_block_forward.1} parent=1 // pred_fallthru
      _
    // Predicated region
    $region62: #{feature_block_forward.1} parent=1 // pred_check
      _
    $region63: #{feature_block_forward.1} parent=1 // pred_check_branch
      %131 = sbr.rel (0) target = $region65
    $region64: #{feature_block_forward.1} parent=1 // pred_region
      _
    $region65: #{feature_block_forward.1} parent=1 // pred_fallthru
      _
    // Predicated region
    $region66: #{feature_block_forward.1} parent=1 // pred_check
      _
    $region67: #{feature_block_forward.1} parent=1 // pred_check_branch
      %133 = sbr.rel (0) target = $region69
    $region68: #{feature_block_forward.1} parent=1 // pred_region
      _
    $region69: #{feature_block_forward.1} parent=1 // pred_fallthru
      _
    // Predicated region
    $region70: #{feature_block_forward.1} parent=1 // pred_check
      _
    $region71: #{feature_block_forward.1} parent=1 // pred_check_branch
      %135 = sbr.rel (0) target = $region73
    $region72: #{feature_block_forward.1} parent=1 // pred_region
      _
    $region73: #{feature_block_forward.1} parent=1 // pred_fallthru
      _
    // Predicated region
    $region74: #{feature_block_forward.1} parent=1 // pred_check
      _
    $region75: #{feature_block_forward.1} parent=1 // pred_check_branch
      %137 = sbr.rel (0) target = $region77
    $region76: #{feature_block_forward.1} parent=1 // pred_region
      _
    $region77: #{feature_block_forward.1} parent=1 // pred_fallthru
      _
    // Predicated region
    $region78: #{feature_block_forward.1} parent=1 // pred_check
      _
    $region79: #{feature_block_forward.1} parent=1 // pred_check_branch
      %139 = sbr.rel (0) target = $region81
    $region80: #{feature_block_forward.1} parent=1 // pred_region
      _
    $region81: #{feature_block_forward.1} parent=1 // pred_fallthru
      _
    // Predicated region
    $region82: #{feature_block_forward.1} parent=1 // pred_check
      _
    $region83: #{feature_block_forward.1} parent=1 // pred_check_branch
      %141 = sbr.rel (0) target = $region85
    $region84: #{feature_block_forward.1} parent=1 // pred_region
      _
    $region85: #{feature_block_forward.1} parent=1 // pred_fallthru
      _
    // Predicated region
    $region86: #{feature_block_forward.1} parent=1 // pred_check
      _
    $region87: #{feature_block_forward.1} parent=1 // pred_check_branch
      %143 = sbr.rel (0) target = $region89
    $region88: #{feature_block_forward.1} parent=1 // pred_region
      _
    $region89: #{feature_block_forward.1} parent=1 // pred_fallthru
      _
    // Predicated region
    $region90: #{feature_block_forward.1} parent=1 // pred_check
      _
    $region91: #{feature_block_forward.1} parent=1 // pred_check_branch
      %145 = sbr.rel (0) target = $region93
    $region92: #{feature_block_forward.1} parent=1 // pred_region
      _
    $region93: #{feature_block_forward.1} parent=1 // pred_fallthru
      _
    // Predicated region
    $region94: #{feature_block_forward.1} parent=1 // pred_check
      _
    $region95: #{feature_block_forward.1} parent=1 // pred_check_branch
      %147 = sbr.rel (0) target = $region97
    $region96: #{feature_block_forward.1} parent=1 // pred_region
      _
    $region97: #{feature_block_forward.1} parent=1 // pred_fallthru
      _
    // Predicated region
    $region98: #{feature_block_forward.1} parent=1 // pred_check
      _
    $region99: #{feature_block_forward.1} parent=1 // pred_check_branch
      %149 = sbr.rel (0) target = $region101
    $region100: #{feature_block_forward.1} parent=1 // pred_region
      _
    $region101: #{feature_block_forward.1} parent=1 // pred_fallthru
      _
    // Predicated region
    $region102: #{feature_block_forward.1} parent=1 // pred_check
      _
    $region103: #{feature_block_forward.1} parent=1 // pred_check_branch
      %151 = sbr.rel (0) target = $region105
    $region104: #{feature_block_forward.1} parent=1 // pred_region
      _
    $region105: #{feature_block_forward.1} parent=1 // pred_fallthru
      _
    // Predicated region
    $region106: #{feature_block_forward.1} parent=1 // pred_check
      _
    $region107: #{feature_block_forward.1} parent=1 // pred_check_branch
      %153 = sbr.rel (0) target = $region109
    $region108: #{feature_block_forward.1} parent=1 // pred_region
      %155 = dma.done [#allocation3], 32
    $region109: #{feature_block_forward.1} parent=1 // pred_fallthru
      _
    // Predicated region
    $region110: #{feature_block_forward.1} parent=1 // pred_check
      _
    $region111: #{feature_block_forward.1} parent=1 // pred_check_branch
      %157 = sbr.rel (0) target = $region113
    $region112: #{feature_block_forward.1} parent=1 // pred_region
      %159 = dma.done [#allocation5], 16
    $region113: #{feature_block_forward.1} parent=1 // pred_fallthru
      _
    // Predicated region
    $region114: #{feature_block_forward.1} parent=1 // pred_check
      _
    $region115: #{feature_block_forward.1} parent=1 // pred_check_branch
      %161 = sbr.rel (0) target = $region117
    $region116: #{feature_block_forward.1} parent=1 // pred_region
      %163 = dma.done [#allocation5], 48
    $region117: #{feature_block_forward.1} parent=1 // pred_fallthru
      _
    // Predicated region
    $region118: #{feature_block_forward.1} parent=1 // pred_check
      _
    $region119: #{feature_block_forward.1} parent=1 // pred_check_branch
      %165 = sbr.rel (0) target = $region121
    $region120: #{feature_block_forward.1} parent=1 // pred_region
      %167 = dma.done [#allocation8], 16
    $region121: #{feature_block_forward.1} parent=1 // pred_fallthru
      _
    // Predicated region
    $region122: #{feature_block_forward.1} parent=1 // pred_check
      _
    $region123: #{feature_block_forward.1} parent=1 // pred_check_branch
      %169 = sbr.rel (0) target = $region125
    $region124: #{feature_block_forward.1} parent=1 // pred_region
      %171 = dma.done [#allocation8], 16
    $region125: #{feature_block_forward.1} parent=1 // pred_fallthru
      _
    // Predicated region
    $region126: #{feature_block_forward.1} parent=1 // pred_check
      _
    $region127: #{feature_block_forward.1} parent=1 // pred_check_branch
      %173 = sbr.rel (0) target = $region129
    $region128: #{feature_block_forward.1} parent=1 // pred_region
      %175 = dma.done [#allocation11], 256
    $region129: #{feature_block_forward.1} parent=1 // pred_fallthru
      _
    // Predicated region
    $region130: #{feature_block_forward.1} parent=1 // pred_check
      _
    $region131: #{feature_block_forward.1} parent=1 // pred_check_branch
      %177 = sbr.rel (0) target = $region133
    $region132: #{feature_block_forward.1} parent=1 // pred_region
      %179 = dma.done [#allocation11], 128
    $region133: #{feature_block_forward.1} parent=1 // pred_fallthru
      _
    %v181 = vld [vmem:[%s0] sm:$0xff]
    %v182 = vld [vmem:[%s0 + $0x8] sm:$0xff]
    %v183 = vld [vmem:[%s0 + $0x10] sm:$0xff]
    %v184 = vld [vmem:[%s0 + $0x18] sm:$0xff]
    %v185 = vld [vmem:[%s20] sm:$0xff]
    %v186 = vld [vmem:[%s20 + $0x8] sm:$0xff]
    %v187 = vld [vmem:[%s20 + $0x10] sm:$0xff]
    %v188 = vld [vmem:[%s20 + $0x18] sm:$0xff]
    %v189 = vld [vmem:[%s21] sm:$0xff]
    %v190 = vld [vmem:[%s21 + $0x8] sm:$0xff]
    %v191 = vld [vmem:[%s21 + $0x10] sm:$0xff]
    %v192 = vld [vmem:[%s21 + $0x18] sm:$0xff]
    %v193 = vrot.slane %v181, 7
    %v194 = vrot.slane %v182, 7
    %v195 = vrot.slane %v183, 7
    %v196 = vrot.slane %v184, 7
    %v197 = vlaneseq
    %v198 = vshrl.u32 %v197, 7
    %vm199 = vcmp.lt.s32.totalorder %v198, 1
    %v200 = vsel %vm199, %v195, %v196
    %v201 = vsel %vm199, %v194, %v195
    %v202 = vsel %vm199, %v193, %v194
    %v203 = vsel %vm199, %v196, %v193
    %205 = vset.pattern.permute.xlu0 0
    %206 = vperm.xlu0 %205, %v185
    %v207 = vpop.permute.xlu0 %206
    %210 = vset.pattern.permute.xlu0 0
    %211 = vperm.xlu0 %210, %v186
    %v212 = vpop.permute.xlu0 %211
    %215 = vset.pattern.permute.xlu0 0
    %216 = vperm.xlu0 %215, %v187
    %v217 = vpop.permute.xlu0 %216
    %220 = vset.pattern.permute.xlu0 0
    %221 = vperm.xlu0 %220, %v188
    %v222 = vpop.permute.xlu0 %221
    %v224 = vmul.f32 %v203, %v207
    %v225 = vmul.f32 %v202, %v212
    %v226 = vmul.f32 %v201, %v217
    %v227 = vmul.f32 %v200, %v222
    %v228 = vrot.slane %v181, 1
    %v229 = vrot.slane %v182, 1
    %v230 = vrot.slane %v183, 1
    %v231 = vrot.slane %v184, 1
    %vm232 = vcmp.lt.s32.totalorder %v198, 7
    %v233 = vsel %vm232, %v230, %v231
    %v234 = vsel %vm232, %v229, %v230
    %v235 = vsel %vm232, %v228, %v229
    %v236 = vsel %vm232, %v231, %v228
    %238 = vset.pattern.permute.xlu0 0
    %239 = vperm.xlu0 %238, %v189
    %v240 = vpop.permute.xlu0 %239
    %243 = vset.pattern.permute.xlu0 0
    %244 = vperm.xlu0 %243, %v190
    %v245 = vpop.permute.xlu0 %244
    %248 = vset.pattern.permute.xlu0 0
    %249 = vperm.xlu0 %248, %v191
    %v250 = vpop.permute.xlu0 %249
    %253 = vset.pattern.permute.xlu0 0
    %254 = vperm.xlu0 %253, %v192
    %v255 = vpop.permute.xlu0 %254
    %v257 = vmul.f32 %v235, %v240
    %v258 = vmul.f32 %v234, %v245
    %v259 = vmul.f32 %v233, %v250
    %v260 = vmul.f32 %v236, %v255
    %265 = vrot.lane.b32.xlu0 %v181, 64
    %v266 = vpop.permute.xlu0 %265
    %267 = vrot.lane.b32.xlu0 %v182, 64
    %v268 = vpop.permute.xlu0 %267
    %269 = vrot.lane.b32.xlu0 %v183, 64
    %v270 = vpop.permute.xlu0 %269
    %271 = vrot.lane.b32.xlu0 %v184, 64
    %v272 = vpop.permute.xlu0 %271
    %vm277 = vcmask 523264
    %v278 = vsel %vm277, %v224, %v266
    %v279 = vsel %vm277, %v225, %v268
    %v280 = vsel %vm277, %v226, %v270
    %v281 = vsel %vm277, %v227, %v272
    %v282 = vpack.c.bf16 %v279, %v278
    %v283 = vpack.c.bf16 %v258, %v257
    %v284 = vpack.c.bf16 %v281, %v280
    %v285 = vpack.c.bf16 %v260, %v259
    %v286 = vld [vmem:[%s1] sm:$0xff]
    %v287 = vld [vmem:[%s1 + $0x8] sm:$0xff]
    %v288 = vld [vmem:[%s1 + $0x10] sm:$0xff]
    %v289 = vld [vmem:[%s1 + $0x18] sm:$0xff]
    %v290 = vld [vmem:[%s1 + $0x20] sm:$0xff]
    %v291 = vld [vmem:[%s1 + $0x28] sm:$0xff]
    %v292 = vld [vmem:[%s1 + $0x30] sm:$0xff]
    %v293 = vld [vmem:[%s1 + $0x38] sm:$0xff]
    %v294 = vld [vmem:[%s1 + $0x40] sm:$0xff]
    %v295 = vld [vmem:[%s1 + $0x48] sm:$0xff]
    %v296 = vld [vmem:[%s1 + $0x50] sm:$0xff]
    %v297 = vld [vmem:[%s1 + $0x58] sm:$0xff]
    %v298 = vld [vmem:[%s1 + $0x60] sm:$0xff]
    %v299 = vld [vmem:[%s1 + $0x68] sm:$0xff]
    %v300 = vld [vmem:[%s1 + $0x70] sm:$0xff]
    %v301 = vld [vmem:[%s1 + $0x78] sm:$0xff]
    %v302 = vld [vmem:[%s1 + $0x80] sm:$0xff]
    %v303 = vld [vmem:[%s1 + $0x88] sm:$0xff]
    %v304 = vld [vmem:[%s1 + $0x90] sm:$0xff]
    %v305 = vld [vmem:[%s1 + $0x98] sm:$0xff]
    %v306 = vld [vmem:[%s1 + $0xa0] sm:$0xff]
    %v307 = vld [vmem:[%s1 + $0xa8] sm:$0xff]
    %v308 = vld [vmem:[%s1 + $0xb0] sm:$0xff]
    %v309 = vld [vmem:[%s1 + $0xb8] sm:$0xff]
    %v310 = vld [vmem:[#allocation2] sm:$0x3]
    %v312 = vperm.slane %v310, 0
    %v313 = vperm.slane %v310, 1
    %v340 = vunpack.c.l.b16 %v286
    %v341 = vunpack.c.h.b16 %v286
    %v342 = vunpack.c.l.b16 %v287
    %v343 = vunpack.c.h.b16 %v287
    %v344 = vunpack.c.l.b16 %v288
    %v345 = vunpack.c.h.b16 %v288
    %v346 = vunpack.c.l.b16 %v289
    %v347 = vunpack.c.h.b16 %v289
    %v348 = vunpack.c.l.b16 %v290
    %v349 = vunpack.c.h.b16 %v290
    %v350 = vunpack.c.l.b16 %v291
    %v351 = vunpack.c.h.b16 %v291
    %v352 = vunpack.c.l.b16 %v292
    %v353 = vunpack.c.h.b16 %v292
    %v354 = vunpack.c.l.b16 %v293
    %v355 = vunpack.c.h.b16 %v293
    %v356 = vunpack.c.l.b16 %v294
    %v357 = vunpack.c.h.b16 %v294
    %v358 = vunpack.c.l.b16 %v295
    %v359 = vunpack.c.h.b16 %v295
    %v360 = vunpack.c.l.b16 %v296
    %v361 = vunpack.c.h.b16 %v296
    %v362 = vunpack.c.l.b16 %v297
    %v363 = vunpack.c.h.b16 %v297
    %v364 = vunpack.c.l.b16 %v298
    %v365 = vunpack.c.h.b16 %v298
    %v366 = vunpack.c.l.b16 %v299
    %v367 = vunpack.c.h.b16 %v299
    %v368 = vunpack.c.l.b16 %v300
    %v369 = vunpack.c.h.b16 %v300
    %v370 = vunpack.c.l.b16 %v301
    %v371 = vunpack.c.h.b16 %v301
    %v372 = vunpack.c.l.b16 %v302
    %v373 = vunpack.c.h.b16 %v302
    %v374 = vunpack.c.l.b16 %v303
    %v375 = vunpack.c.h.b16 %v303
    %v376 = vunpack.c.l.b16 %v304
    %v377 = vunpack.c.h.b16 %v304
    %v378 = vunpack.c.l.b16 %v305
    %v379 = vunpack.c.h.b16 %v305
    %v380 = vunpack.c.l.b16 %v306
    %v381 = vunpack.c.h.b16 %v306
    %v382 = vunpack.c.l.b16 %v307
    %v383 = vunpack.c.h.b16 %v307
    %v384 = vunpack.c.l.b16 %v308
    %v385 = vunpack.c.h.b16 %v308
    %v386 = vunpack.c.l.b16 %v309
    %v387 = vunpack.c.h.b16 %v309
    %v388 = vpack.c.b16 %v342, %v340
    %v389 = vpack.c.b16 %v343, %v341
    %v390 = vpack.c.b16 %v346, %v344
    %v391 = vpack.c.b16 %v347, %v345
    %v392 = vpack.c.b16 %v350, %v348
    %v393 = vpack.c.b16 %v351, %v349
    %v394 = vpack.c.b16 %v354, %v352
    %v395 = vpack.c.b16 %v355, %v353
    %v396 = vpack.c.b16 %v358, %v356
    %v397 = vpack.c.b16 %v359, %v357
    %v398 = vpack.c.b16 %v362, %v360
    %v399 = vpack.c.b16 %v363, %v361
    %v400 = vpack.c.b16 %v366, %v364
    %v401 = vpack.c.b16 %v367, %v365
    %v402 = vpack.c.b16 %v370, %v368
    %v403 = vpack.c.b16 %v371, %v369
    %v404 = vpack.c.b16 %v374, %v372
    %v405 = vpack.c.b16 %v375, %v373
    %v406 = vpack.c.b16 %v378, %v376
    %v407 = vpack.c.b16 %v379, %v377
    %v408 = vpack.c.b16 %v382, %v380
    %v409 = vpack.c.b16 %v383, %v381
    %v410 = vpack.c.b16 %v386, %v384
    %v411 = vpack.c.b16 %v387, %v385
    %v437 = vsel %vm277, %v283, 0
    %v440 = vsel %vm277, %v285, 0
    %442 = vmatpush.bf16.msra.mxu0 %v402
    %443 = vmatpush.bf16.msra.mxu0 %v400
    %444 = vmatpush.bf16.msra.mxu0 %v398
    %445 = vmatpush.bf16.msra.mxu0 %v396
    %446 = vmatpush.bf16.msra.mxu0 %v394
    %447 = vmatpush.bf16.msra.mxu0 %v392
    %448 = vmatpush.bf16.msra.mxu0 %v390
    %449 = vmatpush.bf16.msra.mxu0 %v388
    %450 = vmatmul.bf16.gmra.mxu0 %v282
    %v451 = vpop.f32.mrf.mxu0
    %v452 = vadd.f32 %v312, %v451
    %v453 = vpop.f32.mrf.mxu0
    %v454 = vadd.f32 %v312, %v453
    %455 = vmatmul.bf16.gmra.mxu0 %v284
    %v456 = vpop.f32.mrf.mxu0
    %v457 = vadd.f32 %v312, %v456
    %v458 = vpop.f32.mrf.mxu0
    %v459 = vadd.f32 %v312, %v458
    %460 = vdwg.mxu0
    %461 = vmatpush.bf16.msra.mxu0 0
    %462 = vmatpush.bf16.msra.mxu0 0
    %463 = vmatpush.bf16.msra.mxu0 0
    %464 = vmatpush.bf16.msra.mxu0 0
    %465 = vmatpush.bf16.msra.mxu0 %v410
    %466 = vmatpush.bf16.msra.mxu0 %v408
    %467 = vmatpush.bf16.msra.mxu0 %v406
    %468 = vmatpush.bf16.msra.mxu0 %v404
    %469 = vmatmul.bf16.gmra.mxu0 %v437
    %v470 = vpop.f32.mrf.mxu0
    %v471 = vadd.f32 %v452, %v470
    %v472 = vpop.f32.mrf.mxu0
    %v473 = vadd.f32 %v454, %v472
    %474 = vmatmul.bf16.gmra.mxu0 %v440
    %v475 = vpop.f32.mrf.mxu0
    %v476 = vadd.f32 %v457, %v475
    %v477 = vpop.f32.mrf.mxu0
    %v478 = vadd.f32 %v459, %v477
    %479 = vdwg.mxu0
    %480 = vmatpush.bf16.msra.mxu0 %v403
    %481 = vmatpush.bf16.msra.mxu0 %v401
    %482 = vmatpush.bf16.msra.mxu0 %v399
    %483 = vmatpush.bf16.msra.mxu0 %v397
    %484 = vmatpush.bf16.msra.mxu0 %v395
    %485 = vmatpush.bf16.msra.mxu0 %v393
    %486 = vmatpush.bf16.msra.mxu0 %v391
    %487 = vmatpush.bf16.msra.mxu0 %v389
    %488 = vmatmul.bf16.gmra.mxu0 %v282
    %v489 = vpop.f32.mrf.mxu0
    %v490 = vadd.f32 %v313, %v489
    %v491 = vpop.f32.mrf.mxu0
    %v492 = vadd.f32 %v313, %v491
    %493 = vmatmul.bf16.gmra.mxu0 %v284
    %v494 = vpop.f32.mrf.mxu0
    %v495 = vadd.f32 %v313, %v494
    %v496 = vpop.f32.mrf.mxu0
    %v497 = vadd.f32 %v313, %v496
    %498 = vdwg.mxu0
    %499 = vmatpush.bf16.msra.mxu0 0
    %500 = vmatpush.bf16.msra.mxu0 0
    %501 = vmatpush.bf16.msra.mxu0 0
    %502 = vmatpush.bf16.msra.mxu0 0
    %503 = vmatpush.bf16.msra.mxu0 %v411
    %504 = vmatpush.bf16.msra.mxu0 %v409
    %505 = vmatpush.bf16.msra.mxu0 %v407
    %506 = vmatpush.bf16.msra.mxu0 %v405
    %507 = vmatmul.bf16.gmra.mxu0 %v437
    %v508 = vpop.f32.mrf.mxu0
    %v509 = vadd.f32 %v490, %v508
    %v510 = vpop.f32.mrf.mxu0
    %v511 = vadd.f32 %v492, %v510
    %512 = vmatmul.bf16.gmra.mxu0 %v440
    %v513 = vpop.f32.mrf.mxu0
    %v514 = vadd.f32 %v495, %v513
    %v515 = vpop.f32.mrf.mxu0
    %v516 = vadd.f32 %v497, %v515
    %517 = vdwg.mxu0
    %v518 = vmax.f32 %v471, 0.0
    %v519 = vmax.f32 %v473, 0.0
    %v520 = vmax.f32 %v476, 0.0
    %v521 = vmax.f32 %v478, 0.0
    %v522 = vrot.slane %v518, 7
    %v523 = vrot.slane %v519, 7
    %v524 = vrot.slane %v520, 7
    %v525 = vrot.slane %v521, 7
    %v526 = vsel %vm199, %v524, %v525
    %v527 = vsel %vm199, %v523, %v524
    %v528 = vsel %vm199, %v522, %v523
    %v529 = vsel %vm199, %v525, %v522
    %v530 = vmul.f32 %v529, %v207
    %v531 = vmul.f32 %v528, %v212
    %v532 = vmul.f32 %v527, %v217
    %v533 = vmul.f32 %v526, %v222
    %v534 = vrot.slane %v518, 1
    %v535 = vrot.slane %v519, 1
    %v536 = vrot.slane %v520, 1
    %v537 = vrot.slane %v521, 1
    %v538 = vsel %vm232, %v536, %v537
    %v539 = vsel %vm232, %v535, %v536
    %v540 = vsel %vm232, %v534, %v535
    %v541 = vsel %vm232, %v537, %v534
    %v542 = vmul.f32 %v540, %v240
    %v543 = vmul.f32 %v539, %v245
    %v544 = vmul.f32 %v538, %v250
    %v545 = vmul.f32 %v541, %v255
    %v546 = vpack.c.bf16 %v531, %v530
    %v547 = vpack.c.bf16 %v519, %v518
    %v548 = vpack.c.bf16 %v543, %v542
    %v549 = vpack.c.bf16 %v533, %v532
    %v550 = vpack.c.bf16 %v521, %v520
    %v551 = vpack.c.bf16 %v545, %v544
    %v552 = vld [vmem:[%s3] sm:$0xf]
    %v553 = vld [vmem:[%s3 + $0x4] sm:$0xf]
    %v554 = vld [vmem:[%s3 + $0x8] sm:$0xf]
    %v555 = vld [vmem:[%s3 + $0xc] sm:$0xf]
    %v556 = vld [vmem:[%s3 + $0x10] sm:$0xf]
    %v557 = vld [vmem:[%s3 + $0x14] sm:$0xf]
    %v558 = vld [vmem:[%s3 + $0x18] sm:$0xf]
    %v559 = vld [vmem:[%s3 + $0x1c] sm:$0xf]
    %v560 = vld [vmem:[%s3 + $0x20] sm:$0xf]
    %v561 = vld [vmem:[%s3 + $0x24] sm:$0xf]
    %v562 = vld [vmem:[%s3 + $0x28] sm:$0xf]
    %v563 = vld [vmem:[%s3 + $0x2c] sm:$0xf]
    %v564 = vld [vmem:[%s3 + $0x30] sm:$0xf]
    %v565 = vld [vmem:[%s3 + $0x34] sm:$0xf]
    %v566 = vld [vmem:[%s3 + $0x38] sm:$0xf]
    %v567 = vld [vmem:[%s3 + $0x3c] sm:$0xf]
    %v568 = vld [vmem:[%s3 + $0x40] sm:$0xf]
    %v569 = vld [vmem:[%s3 + $0x44] sm:$0xf]
    %v570 = vld [vmem:[%s3 + $0x48] sm:$0xf]
    %v571 = vld [vmem:[%s3 + $0x4c] sm:$0xf]
    %v572 = vld [vmem:[%s3 + $0x50] sm:$0xf]
    %v573 = vld [vmem:[%s3 + $0x54] sm:$0xf]
    %v574 = vld [vmem:[%s3 + $0x58] sm:$0xf]
    %v575 = vld [vmem:[%s3 + $0x5c] sm:$0xf]
    %v576 = vld [vmem:[%s3 + $0x60] sm:$0xf]
    %v577 = vld [vmem:[%s3 + $0x64] sm:$0xf]
    %v578 = vld [vmem:[%s3 + $0x68] sm:$0xf]
    %v579 = vld [vmem:[%s3 + $0x6c] sm:$0xf]
    %v580 = vld [vmem:[%s3 + $0x70] sm:$0xf]
    %v581 = vld [vmem:[%s3 + $0x74] sm:$0xf]
    %v582 = vld [vmem:[%s3 + $0x78] sm:$0xf]
    %v583 = vld [vmem:[%s3 + $0x7c] sm:$0xf]
    %v584 = vld [vmem:[%s3 + $0x80] sm:$0xf]
    %v585 = vld [vmem:[%s3 + $0x84] sm:$0xf]
    %v586 = vld [vmem:[%s3 + $0x88] sm:$0xf]
    %v587 = vld [vmem:[%s3 + $0x8c] sm:$0xf]
    %v588 = vld [vmem:[%s3 + $0x90] sm:$0xf]
    %v589 = vld [vmem:[%s3 + $0x94] sm:$0xf]
    %v590 = vld [vmem:[%s3 + $0x98] sm:$0xf]
    %v591 = vld [vmem:[%s3 + $0x9c] sm:$0xf]
    %v592 = vld [vmem:[%s3 + $0xa0] sm:$0xf]
    %v593 = vld [vmem:[%s3 + $0xa4] sm:$0xf]
    %v594 = vld [vmem:[%s3 + $0xa8] sm:$0xf]
    %v595 = vld [vmem:[%s3 + $0xac] sm:$0xf]
    %v596 = vld [vmem:[%s3 + $0xb0] sm:$0xf]
    %v597 = vld [vmem:[%s3 + $0xb4] sm:$0xf]
    %v598 = vld [vmem:[%s3 + $0xb8] sm:$0xf]
    %v599 = vld [vmem:[%s3 + $0xbc] sm:$0xf]
    %v600 = vld [vmem:[#allocation4] sm:$0x1]
    %v602 = vperm.slane %v600, 0
    %v652 = vunpack.c.l.b16 %v552
    %v653 = vunpack.c.l.b16 %v553
    %v654 = vunpack.c.l.b16 %v554
    %v655 = vunpack.c.l.b16 %v555
    %v656 = vunpack.c.l.b16 %v556
    %v657 = vunpack.c.l.b16 %v557
    %v658 = vunpack.c.l.b16 %v558
    %v659 = vunpack.c.l.b16 %v559
    %v660 = vunpack.c.l.b16 %v560
    %v661 = vunpack.c.l.b16 %v561
    %v662 = vunpack.c.l.b16 %v562
    %v663 = vunpack.c.l.b16 %v563
    %v664 = vunpack.c.l.b16 %v564
    %v665 = vunpack.c.l.b16 %v565
    %v666 = vunpack.c.l.b16 %v566
    %v667 = vunpack.c.l.b16 %v567
    %v668 = vunpack.c.l.b16 %v568
    %v669 = vunpack.c.l.b16 %v569
    %v670 = vunpack.c.l.b16 %v570
    %v671 = vunpack.c.l.b16 %v571
    %v672 = vunpack.c.l.b16 %v572
    %v673 = vunpack.c.l.b16 %v573
    %v674 = vunpack.c.l.b16 %v574
    %v675 = vunpack.c.l.b16 %v575
    %v676 = vunpack.c.l.b16 %v576
    %v677 = vunpack.c.l.b16 %v577
    %v678 = vunpack.c.l.b16 %v578
    %v679 = vunpack.c.l.b16 %v579
    %v680 = vunpack.c.l.b16 %v580
    %v681 = vunpack.c.l.b16 %v581
    %v682 = vunpack.c.l.b16 %v582
    %v683 = vunpack.c.l.b16 %v583
    %v684 = vunpack.c.l.b16 %v584
    %v685 = vunpack.c.l.b16 %v585
    %v686 = vunpack.c.l.b16 %v586
    %v687 = vunpack.c.l.b16 %v587
    %v688 = vunpack.c.l.b16 %v588
    %v689 = vunpack.c.l.b16 %v589
    %v690 = vunpack.c.l.b16 %v590
    %v691 = vunpack.c.l.b16 %v591
    %v692 = vunpack.c.l.b16 %v592
    %v693 = vunpack.c.l.b16 %v593
    %v694 = vunpack.c.l.b16 %v594
    %v695 = vunpack.c.l.b16 %v595
    %v696 = vunpack.c.l.b16 %v596
    %v697 = vunpack.c.l.b16 %v597
    %v698 = vunpack.c.l.b16 %v598
    %v699 = vunpack.c.l.b16 %v599
    %v700 = vpack.c.b16 %v653, %v652
    %v701 = vpack.c.b16 %v655, %v654
    %v702 = vpack.c.b16 %v657, %v656
    %v703 = vpack.c.b16 %v659, %v658
    %v704 = vpack.c.b16 %v661, %v660
    %v705 = vpack.c.b16 %v663, %v662
    %v706 = vpack.c.b16 %v665, %v664
    %v707 = vpack.c.b16 %v667, %v666
    %v708 = vpack.c.b16 %v669, %v668
    %v709 = vpack.c.b16 %v671, %v670
    %v710 = vpack.c.b16 %v673, %v672
    %v711 = vpack.c.b16 %v675, %v674
    %v712 = vpack.c.b16 %v677, %v676
    %v713 = vpack.c.b16 %v679, %v678
    %v714 = vpack.c.b16 %v681, %v680
    %v715 = vpack.c.b16 %v683, %v682
    %v716 = vpack.c.b16 %v685, %v684
    %v717 = vpack.c.b16 %v687, %v686
    %v718 = vpack.c.b16 %v689, %v688
    %v719 = vpack.c.b16 %v691, %v690
    %v720 = vpack.c.b16 %v693, %v692
    %v721 = vpack.c.b16 %v695, %v694
    %v722 = vpack.c.b16 %v697, %v696
    %v723 = vpack.c.b16 %v699, %v698
    %748 = vmatpush.bf16.msra.mxu0 %v707
    %749 = vmatpush.bf16.msra.mxu0 %v706
    %750 = vmatpush.bf16.msra.mxu0 %v705
    %751 = vmatpush.bf16.msra.mxu0 %v704
    %752 = vmatpush.bf16.msra.mxu0 %v703
    %753 = vmatpush.bf16.msra.mxu0 %v702
    %754 = vmatpush.bf16.msra.mxu0 %v701
    %755 = vmatpush.bf16.msra.mxu0 %v700
    %756 = vmatmul.bf16.gmra.mxu0 %v546
    %v757 = vpop.f32.mrf.mxu0
    %v758 = vadd.f32 %v602, %v757
    %v759 = vpop.f32.mrf.mxu0
    %v760 = vadd.f32 %v602, %v759
    %761 = vmatmul.bf16.gmra.mxu0 %v549
    %v762 = vpop.f32.mrf.mxu0
    %v763 = vadd.f32 %v602, %v762
    %v764 = vpop.f32.mrf.mxu0
    %v765 = vadd.f32 %v602, %v764
    %766 = vdwg.mxu0
    %767 = vmatpush.bf16.msra.mxu0 %v715
    %768 = vmatpush.bf16.msra.mxu0 %v714
    %769 = vmatpush.bf16.msra.mxu0 %v713
    %770 = vmatpush.bf16.msra.mxu0 %v712
    %771 = vmatpush.bf16.msra.mxu0 %v711
    %772 = vmatpush.bf16.msra.mxu0 %v710
    %773 = vmatpush.bf16.msra.mxu0 %v709
    %774 = vmatpush.bf16.msra.mxu0 %v708
    %775 = vmatmul.bf16.gmra.mxu0 %v547
    %v776 = vpop.f32.mrf.mxu0
    %v777 = vadd.f32 %v758, %v776
    %v778 = vpop.f32.mrf.mxu0
    %v779 = vadd.f32 %v760, %v778
    %780 = vmatmul.bf16.gmra.mxu0 %v550
    %v781 = vpop.f32.mrf.mxu0
    %v782 = vadd.f32 %v763, %v781
    %v783 = vpop.f32.mrf.mxu0
    %v784 = vadd.f32 %v765, %v783
    %785 = vdwg.mxu0
    %786 = vmatpush.bf16.msra.mxu0 %v723
    %787 = vmatpush.bf16.msra.mxu0 %v722
    %788 = vmatpush.bf16.msra.mxu0 %v721
    %789 = vmatpush.bf16.msra.mxu0 %v720
    %790 = vmatpush.bf16.msra.mxu0 %v719
    %791 = vmatpush.bf16.msra.mxu0 %v718
    %792 = vmatpush.bf16.msra.mxu0 %v717
    %793 = vmatpush.bf16.msra.mxu0 %v716
    %794 = vmatmul.bf16.gmra.mxu0 %v548
    %v795 = vpop.f32.mrf.mxu0
    %v796 = vadd.f32 %v777, %v795
    %v797 = vpop.f32.mrf.mxu0
    %v798 = vadd.f32 %v779, %v797
    %799 = vmatmul.bf16.gmra.mxu0 %v551
    %v800 = vpop.f32.mrf.mxu0
    %v801 = vadd.f32 %v782, %v800
    %v802 = vpop.f32.mrf.mxu0
    %v803 = vadd.f32 %v784, %v802
    %804 = vdwg.mxu0
    %v805 = vadd.f32 %v796, %v509
    %v806 = vadd.f32 %v798, %v511
    %v807 = vadd.f32 %v801, %v514
    %v808 = vadd.f32 %v803, %v516
    %v809 = vmax.f32 %v805, 0.0
    %v810 = vmax.f32 %v806, 0.0
    %v811 = vmax.f32 %v807, 0.0
    %v812 = vmax.f32 %v808, 0.0
    %v813 = vld [vmem:[#allocation10] sm:$0xff]
    %v814 = vld [vmem:[#allocation10 + $0x8] sm:$0xff]
    %vm815 = vcmask 261120
    %v817 = vsel %vm815, %v813, 0
    %v820 = vsel %vm815, %v814, 0
    %822 = vmatpush.msra.mxu0 0.0
    %823 = vmatpush.msra.mxu0 0.0
    %824 = vmatpush.msra.mxu0 0.0
    %825 = vmatpush.msra.mxu0 0.0
    %826 = vmatpush.msra.mxu0 0.0
    %827 = vmatpush.msra.mxu0 0.0
    %828 = vmatpush.msra.mxu0 0.0
    %829 = vmatpush.msra.mxu0 0.0
    %830 = vmatpush.msra.mxu0 0.0
    %831 = vmatpush.msra.mxu0 0.0
    %832 = vmatpush.msra.mxu0 0.0
    %833 = vmatpush.msra.mxu0 0.0
    %834 = vmatpush.msra.mxu0 %v812
    %835 = vmatpush.msra.mxu0 %v811
    %836 = vmatpush.msra.mxu0 %v810
    %837 = vmatpush.msra.mxu0 %v809
    %838 = vmatmul.f32.gmra.mxu0 %v817
    %v839 = vpop.f32.mrf.mxu0
    %v840 = vadd.f32 0.0, %v839
    %841 = vmatmul.f32.gmra.mxu0 %v820
    %v842 = vpop.f32.mrf.mxu0
    %v843 = vadd.f32 0.0, %v842
    %844 = vdwg.mxu0
    %v845 = vld [vmem:[%s12] sm:$0xff]
    %v846 = vld [vmem:[%s12 + $0x8] sm:$0xff]
    %v847 = vld [vmem:[%s12 + $0x10] sm:$0xff]
    %v848 = vld [vmem:[%s12 + $0x18] sm:$0xff]
    %v849 = vld [vmem:[%s12 + $0x20] sm:$0xff]
    %v850 = vld [vmem:[%s12 + $0x28] sm:$0xff]
    %v851 = vld [vmem:[%s12 + $0x30] sm:$0xff]
    %v852 = vld [vmem:[%s12 + $0x38] sm:$0xff]
    %v853 = vld [vmem:[%s12 + $0x40] sm:$0xff]
    %v854 = vld [vmem:[%s12 + $0x48] sm:$0xff]
    %v855 = vld [vmem:[%s12 + $0x50] sm:$0xff]
    %v856 = vld [vmem:[%s12 + $0x58] sm:$0xff]
    %v857 = vld [vmem:[%s12 + $0x60] sm:$0xff]
    %v858 = vld [vmem:[%s12 + $0x68] sm:$0xff]
    %v859 = vld [vmem:[%s12 + $0x70] sm:$0xff]
    %v860 = vld [vmem:[%s12 + $0x78] sm:$0xff]
    %861 = vmatpush.msra.mxu0 %v860
    %862 = vmatpush.msra.mxu0 %v859
    %863 = vmatpush.msra.mxu0 %v858
    %864 = vmatpush.msra.mxu0 %v857
    %865 = vmatpush.msra.mxu0 %v856
    %866 = vmatpush.msra.mxu0 %v855
    %867 = vmatpush.msra.mxu0 %v854
    %868 = vmatpush.msra.mxu0 %v853
    %869 = vmatpush.msra.mxu0 %v852
    %870 = vmatpush.msra.mxu0 %v851
    %871 = vmatpush.msra.mxu0 %v850
    %872 = vmatpush.msra.mxu0 %v849
    %873 = vmatpush.msra.mxu0 %v848
    %874 = vmatpush.msra.mxu0 %v847
    %875 = vmatpush.msra.mxu0 %v846
    %876 = vmatpush.msra.mxu0 %v845
    %877 = vmatmul.f32.gmra.mxu0 %v840
    %v878 = vpop.f32.mrf.mxu0
    %v879 = vadd.f32 0.0, %v878
    %880 = vmatmul.f32.gmra.mxu0 %v843
    %v881 = vpop.f32.mrf.mxu0
    %v882 = vadd.f32 0.0, %v881
    %883 = vdwg.mxu0
    %v884 = vld [vmem:[%s22] sm:$0xff]
    %v885 = vld [vmem:[%s22 + $0x8] sm:$0xff]
    %v886 = vld [vmem:[%s23] sm:$0xff]
    %v887 = vld [vmem:[%s23 + $0x8] sm:$0xff]
    %v888 = vrot.slane %v879, 7
    %v889 = vrot.slane %v882, 7
    %v890 = vsel %vm199, %v888, %v889
    %v891 = vsel %vm199, %v889, %v888
    %893 = vset.pattern.permute.xlu0 0
    %894 = vperm.xlu0 %893, %v884
    %v895 = vpop.permute.xlu0 %894
    %898 = vset.pattern.permute.xlu0 0
    %899 = vperm.xlu0 %898, %v885
    %v900 = vpop.permute.xlu0 %899
    %v902 = vmul.f32 %v891, %v895
    %v903 = vmul.f32 %v890, %v900
    %v904 = vrot.slane %v879, 1
    %v905 = vrot.slane %v882, 1
    %v906 = vsel %vm232, %v904, %v905
    %v907 = vsel %vm232, %v905, %v904
    %909 = vset.pattern.permute.xlu0 0
    %910 = vperm.xlu0 %909, %v886
    %v911 = vpop.permute.xlu0 %910
    %914 = vset.pattern.permute.xlu0 0
    %915 = vperm.xlu0 %914, %v887
    %v916 = vpop.permute.xlu0 %915
    %v918 = vmul.f32 %v906, %v911
    %v919 = vmul.f32 %v907, %v916
    %922 = vrot.lane.b32.xlu0 %v879, 64
    %v923 = vpop.permute.xlu0 %922
    %924 = vrot.lane.b32.xlu0 %v882, 64
    %v925 = vpop.permute.xlu0 %924
    %v928 = vsel %vm277, %v902, %v923
    %v929 = vsel %vm277, %v903, %v925
    %v930 = vpack.c.bf16 %v929, %v928
    %v931 = vpack.c.bf16 %v919, %v918
    %v932 = vld [vmem:[%s5] sm:$0xff]
    %v933 = vld [vmem:[%s5 + $0x8] sm:$0xf]
    %v934 = vld [vmem:[%s5 + $0xc] sm:$0xff]
    %v935 = vld [vmem:[%s5 + $0x14] sm:$0xf]
    %v936 = vld [vmem:[%s5 + $0x18] sm:$0xff]
    %v937 = vld [vmem:[%s5 + $0x20] sm:$0xf]
    %v938 = vld [vmem:[%s5 + $0x24] sm:$0xff]
    %v939 = vld [vmem:[%s5 + $0x2c] sm:$0xf]
    %v940 = vld [vmem:[%s5 + $0x30] sm:$0xff]
    %v941 = vld [vmem:[%s5 + $0x38] sm:$0xf]
    %v942 = vld [vmem:[%s5 + $0x3c] sm:$0xff]
    %v943 = vld [vmem:[%s5 + $0x44] sm:$0xf]
    %v944 = vld [vmem:[%s5 + $0x48] sm:$0xff]
    %v945 = vld [vmem:[%s5 + $0x50] sm:$0xf]
    %v946 = vld [vmem:[%s5 + $0x54] sm:$0xff]
    %v947 = vld [vmem:[%s5 + $0x5c] sm:$0xf]
    %v948 = vld [vmem:[%s5 + $0x60] sm:$0xff]
    %v949 = vld [vmem:[%s5 + $0x68] sm:$0xf]
    %v950 = vld [vmem:[%s5 + $0x6c] sm:$0xff]
    %v951 = vld [vmem:[%s5 + $0x74] sm:$0xf]
    %v952 = vld [vmem:[%s5 + $0x78] sm:$0xff]
    %v953 = vld [vmem:[%s5 + $0x80] sm:$0xf]
    %v954 = vld [vmem:[%s5 + $0x84] sm:$0xff]
    %v955 = vld [vmem:[%s5 + $0x8c] sm:$0xf]
    %v956 = vld [vmem:[%s5 + $0x90] sm:$0xff]
    %v957 = vld [vmem:[%s5 + $0x98] sm:$0xf]
    %v958 = vld [vmem:[%s5 + $0x9c] sm:$0xff]
    %v959 = vld [vmem:[%s5 + $0xa4] sm:$0xf]
    %v960 = vld [vmem:[%s5 + $0xa8] sm:$0xff]
    %v961 = vld [vmem:[%s5 + $0xb0] sm:$0xf]
    %v962 = vld [vmem:[%s5 + $0xb4] sm:$0xff]
    %v963 = vld [vmem:[%s5 + $0xbc] sm:$0xf]
    %v964 = vld [vmem:[%s5 + $0xc0] sm:$0xff]
    %v965 = vld [vmem:[%s5 + $0xc8] sm:$0xf]
    %v966 = vld [vmem:[%s5 + $0xcc] sm:$0xff]
    %v967 = vld [vmem:[%s5 + $0xd4] sm:$0xf]
    %v968 = vld [vmem:[%s5 + $0xd8] sm:$0xff]
    %v969 = vld [vmem:[%s5 + $0xe0] sm:$0xf]
    %v970 = vld [vmem:[%s5 + $0xe4] sm:$0xff]
    %v971 = vld [vmem:[%s5 + $0xec] sm:$0xf]
    %v972 = vld [vmem:[%s5 + $0xf0] sm:$0xff]
    %v973 = vld [vmem:[%s5 + $0xf8] sm:$0xf]
    %v974 = vld [vmem:[%s5 + $0xfc] sm:$0xff]
    %v975 = vld [vmem:[%s5 + $0x104] sm:$0xf]
    %v976 = vld [vmem:[%s5 + $0x108] sm:$0xff]
    %v977 = vld [vmem:[%s5 + $0x110] sm:$0xf]
    %v978 = vld [vmem:[%s5 + $0x114] sm:$0xff]
    %v979 = vld [vmem:[%s5 + $0x11c] sm:$0xf]
    %v980 = vld [vmem:[#allocation6] sm:$0x7]
    %v982 = vperm.slane %v980, 0
    %v983 = vperm.slane %v980, 1
    %v984 = vperm.slane %v980, 2
    %v1036 = vunpack.c.l.b16 %v932
    %v1037 = vunpack.c.h.b16 %v932
    %v1038 = vunpack.c.l.b16 %v933
    %v1039 = vunpack.c.l.b16 %v934
    %v1040 = vunpack.c.h.b16 %v934
    %v1041 = vunpack.c.l.b16 %v935
    %v1042 = vunpack.c.l.b16 %v936
    %v1043 = vunpack.c.h.b16 %v936
    %v1044 = vunpack.c.l.b16 %v937
    %v1045 = vunpack.c.l.b16 %v938
    %v1046 = vunpack.c.h.b16 %v938
    %v1047 = vunpack.c.l.b16 %v939
    %v1048 = vunpack.c.l.b16 %v940
    %v1049 = vunpack.c.h.b16 %v940
    %v1050 = vunpack.c.l.b16 %v941
    %v1051 = vunpack.c.l.b16 %v942
    %v1052 = vunpack.c.h.b16 %v942
    %v1053 = vunpack.c.l.b16 %v943
    %v1054 = vunpack.c.l.b16 %v944
    %v1055 = vunpack.c.h.b16 %v944
    %v1056 = vunpack.c.l.b16 %v945
    %v1057 = vunpack.c.l.b16 %v946
    %v1058 = vunpack.c.h.b16 %v946
    %v1059 = vunpack.c.l.b16 %v947
    %v1060 = vunpack.c.l.b16 %v948
    %v1061 = vunpack.c.h.b16 %v948
    %v1062 = vunpack.c.l.b16 %v949
    %v1063 = vunpack.c.l.b16 %v950
    %v1064 = vunpack.c.h.b16 %v950
    %v1065 = vunpack.c.l.b16 %v951
    %v1066 = vunpack.c.l.b16 %v952
    %v1067 = vunpack.c.h.b16 %v952
    %v1068 = vunpack.c.l.b16 %v953
    %v1069 = vunpack.c.l.b16 %v954
    %v1070 = vunpack.c.h.b16 %v954
    %v1071 = vunpack.c.l.b16 %v955
    %v1072 = vunpack.c.l.b16 %v956
    %v1073 = vunpack.c.h.b16 %v956
    %v1074 = vunpack.c.l.b16 %v957
    %v1075 = vunpack.c.l.b16 %v958
    %v1076 = vunpack.c.h.b16 %v958
    %v1077 = vunpack.c.l.b16 %v959
    %v1078 = vunpack.c.l.b16 %v960
    %v1079 = vunpack.c.h.b16 %v960
    %v1080 = vunpack.c.l.b16 %v961
    %v1081 = vunpack.c.l.b16 %v962
    %v1082 = vunpack.c.h.b16 %v962
    %v1083 = vunpack.c.l.b16 %v963
    %v1084 = vunpack.c.l.b16 %v964
    %v1085 = vunpack.c.h.b16 %v964
    %v1086 = vunpack.c.l.b16 %v965
    %v1087 = vunpack.c.l.b16 %v966
    %v1088 = vunpack.c.h.b16 %v966
    %v1089 = vunpack.c.l.b16 %v967
    %v1090 = vunpack.c.l.b16 %v968
    %v1091 = vunpack.c.h.b16 %v968
    %v1092 = vunpack.c.l.b16 %v969
    %v1093 = vunpack.c.l.b16 %v970
    %v1094 = vunpack.c.h.b16 %v970
    %v1095 = vunpack.c.l.b16 %v971
    %v1096 = vunpack.c.l.b16 %v972
    %v1097 = vunpack.c.h.b16 %v972
    %v1098 = vunpack.c.l.b16 %v973
    %v1099 = vunpack.c.l.b16 %v974
    %v1100 = vunpack.c.h.b16 %v974
    %v1101 = vunpack.c.l.b16 %v975
    %v1102 = vunpack.c.l.b16 %v976
    %v1103 = vunpack.c.h.b16 %v976
    %v1104 = vunpack.c.l.b16 %v977
    %v1105 = vunpack.c.l.b16 %v978
    %v1106 = vunpack.c.h.b16 %v978
    %v1107 = vunpack.c.l.b16 %v979
    %v1108 = vpack.c.b16 %v1039, %v1036
    %v1109 = vpack.c.b16 %v1040, %v1037
    %v1110 = vpack.c.b16 %v1041, %v1038
    %v1111 = vpack.c.b16 %v1045, %v1042
    %v1112 = vpack.c.b16 %v1046, %v1043
    %v1113 = vpack.c.b16 %v1047, %v1044
    %v1114 = vpack.c.b16 %v1051, %v1048
    %v1115 = vpack.c.b16 %v1052, %v1049
    %v1116 = vpack.c.b16 %v1053, %v1050
    %v1117 = vpack.c.b16 %v1057, %v1054
    %v1118 = vpack.c.b16 %v1058, %v1055
    %v1119 = vpack.c.b16 %v1059, %v1056
    %v1120 = vpack.c.b16 %v1063, %v1060
    %v1121 = vpack.c.b16 %v1064, %v1061
    %v1122 = vpack.c.b16 %v1065, %v1062
    %v1123 = vpack.c.b16 %v1069, %v1066
    %v1124 = vpack.c.b16 %v1070, %v1067
    %v1125 = vpack.c.b16 %v1071, %v1068
    %v1126 = vpack.c.b16 %v1075, %v1072
    %v1127 = vpack.c.b16 %v1076, %v1073
    %v1128 = vpack.c.b16 %v1077, %v1074
    %v1129 = vpack.c.b16 %v1081, %v1078
    %v1130 = vpack.c.b16 %v1082, %v1079
    %v1131 = vpack.c.b16 %v1083, %v1080
    %v1132 = vpack.c.b16 %v1087, %v1084
    %v1133 = vpack.c.b16 %v1088, %v1085
    %v1134 = vpack.c.b16 %v1089, %v1086
    %v1135 = vpack.c.b16 %v1093, %v1090
    %v1136 = vpack.c.b16 %v1094, %v1091
    %v1137 = vpack.c.b16 %v1095, %v1092
    %v1138 = vpack.c.b16 %v1099, %v1096
    %v1139 = vpack.c.b16 %v1100, %v1097
    %v1140 = vpack.c.b16 %v1101, %v1098
    %v1141 = vpack.c.b16 %v1105, %v1102
    %v1142 = vpack.c.b16 %v1106, %v1103
    %v1143 = vpack.c.b16 %v1107, %v1104
    %v1181 = vsel %vm277, %v931, 0
    %1183 = vmatpush.bf16.msra.mxu0 %v1129
    %1184 = vmatpush.bf16.msra.mxu0 %v1126
    %1185 = vmatpush.bf16.msra.mxu0 %v1123
    %1186 = vmatpush.bf16.msra.mxu0 %v1120
    %1187 = vmatpush.bf16.msra.mxu0 %v1117
    %1188 = vmatpush.bf16.msra.mxu0 %v1114
    %1189 = vmatpush.bf16.msra.mxu0 %v1111
    %1190 = vmatpush.bf16.msra.mxu0 %v1108
    %1191 = vmatmul.bf16.gmra.mxu0 %v930
    %v1192 = vpop.f32.mrf.mxu0
    %v1193 = vadd.f32 %v982, %v1192
    %v1194 = vpop.f32.mrf.mxu0
    %v1195 = vadd.f32 %v982, %v1194
    %1196 = vdwg.mxu0
    %1197 = vmatpush.bf16.msra.mxu0 0
    %1198 = vmatpush.bf16.msra.mxu0 0
    %1199 = vmatpush.bf16.msra.mxu0 0
    %1200 = vmatpush.bf16.msra.mxu0 0
    %1201 = vmatpush.bf16.msra.mxu0 %v1141
    %1202 = vmatpush.bf16.msra.mxu0 %v1138
    %1203 = vmatpush.bf16.msra.mxu0 %v1135
    %1204 = vmatpush.bf16.msra.mxu0 %v1132
    %1205 = vmatmul.bf16.gmra.mxu0 %v1181
    %v1206 = vpop.f32.mrf.mxu0
    %v1207 = vadd.f32 %v1193, %v1206
    %v1208 = vpop.f32.mrf.mxu0
    %v1209 = vadd.f32 %v1195, %v1208
    %1210 = vdwg.mxu0
    %1211 = vmatpush.bf16.msra.mxu0 %v1130
    %1212 = vmatpush.bf16.msra.mxu0 %v1127
    %1213 = vmatpush.bf16.msra.mxu0 %v1124
    %1214 = vmatpush.bf16.msra.mxu0 %v1121
    %1215 = vmatpush.bf16.msra.mxu0 %v1118
    %1216 = vmatpush.bf16.msra.mxu0 %v1115
    %1217 = vmatpush.bf16.msra.mxu0 %v1112
    %1218 = vmatpush.bf16.msra.mxu0 %v1109
    %1219 = vmatmul.bf16.gmra.mxu0 %v930
    %v1220 = vpop.f32.mrf.mxu0
    %v1221 = vadd.f32 %v983, %v1220
    %v1222 = vpop.f32.mrf.mxu0
    %v1223 = vadd.f32 %v983, %v1222
    %1224 = vdwg.mxu0
    %1225 = vmatpush.bf16.msra.mxu0 0
    %1226 = vmatpush.bf16.msra.mxu0 0
    %1227 = vmatpush.bf16.msra.mxu0 0
    %1228 = vmatpush.bf16.msra.mxu0 0
    %1229 = vmatpush.bf16.msra.mxu0 %v1142
    %1230 = vmatpush.bf16.msra.mxu0 %v1139
    %1231 = vmatpush.bf16.msra.mxu0 %v1136
    %1232 = vmatpush.bf16.msra.mxu0 %v1133
    %1233 = vmatmul.bf16.gmra.mxu0 %v1181
    %v1234 = vpop.f32.mrf.mxu0
    %v1235 = vadd.f32 %v1221, %v1234
    %v1236 = vpop.f32.mrf.mxu0
    %v1237 = vadd.f32 %v1223, %v1236
    %1238 = vdwg.mxu0
    %1239 = vmatpush.bf16.msra.mxu0 %v1131
    %1240 = vmatpush.bf16.msra.mxu0 %v1128
    %1241 = vmatpush.bf16.msra.mxu0 %v1125
    %1242 = vmatpush.bf16.msra.mxu0 %v1122
    %1243 = vmatpush.bf16.msra.mxu0 %v1119
    %1244 = vmatpush.bf16.msra.mxu0 %v1116
    %1245 = vmatpush.bf16.msra.mxu0 %v1113
    %1246 = vmatpush.bf16.msra.mxu0 %v1110
    %1247 = vmatmul.bf16.gmra.mxu0 %v930
    %v1248 = vpop.f32.mrf.mxu0
    %v1249 = vadd.f32 %v984, %v1248
    %v1250 = vpop.f32.mrf.mxu0
    %v1251 = vadd.f32 %v984, %v1250
    %1252 = vdwg.mxu0
    %1253 = vmatpush.bf16.msra.mxu0 0
    %1254 = vmatpush.bf16.msra.mxu0 0
    %1255 = vmatpush.bf16.msra.mxu0 0
    %1256 = vmatpush.bf16.msra.mxu0 0
    %1257 = vmatpush.bf16.msra.mxu0 %v1143
    %1258 = vmatpush.bf16.msra.mxu0 %v1140
    %1259 = vmatpush.bf16.msra.mxu0 %v1137
    %1260 = vmatpush.bf16.msra.mxu0 %v1134
    %1261 = vmatmul.bf16.gmra.mxu0 %v1181
    %v1262 = vpop.f32.mrf.mxu0
    %v1263 = vadd.f32 %v1249, %v1262
    %v1264 = vpop.f32.mrf.mxu0
    %v1265 = vadd.f32 %v1251, %v1264
    %1266 = vdwg.mxu0
    %v1267 = vmax.f32 %v1207, 0.0
    %v1268 = vmax.f32 %v1209, 0.0
    %v1269 = vrot.slane %v1267, 7
    %v1270 = vrot.slane %v1268, 7
    %v1271 = vsel %vm199, %v1269, %v1270
    %v1272 = vsel %vm199, %v1270, %v1269
    %v1273 = vmul.f32 %v1272, %v895
    %v1274 = vmul.f32 %v1271, %v900
    %v1275 = vrot.slane %v1267, 1
    %v1276 = vrot.slane %v1268, 1
    %v1277 = vsel %vm232, %v1275, %v1276
    %v1278 = vsel %vm232, %v1276, %v1275
    %v1279 = vmul.f32 %v1277, %v911
    %v1280 = vmul.f32 %v1278, %v916
    %v1281 = vpack.c.bf16 %v1274, %v1273
    %v1282 = vpack.c.bf16 %v1268, %v1267
    %v1283 = vpack.c.bf16 %v1280, %v1279
    %v1284 = vld [vmem:[%s7] sm:$0xf]
    %v1285 = vld [vmem:[%s7 + $0x4] sm:$0xf]
    %v1286 = vld [vmem:[%s7 + $0x8] sm:$0xf]
    %v1287 = vld [vmem:[%s7 + $0xc] sm:$0xf]
    %v1288 = vld [vmem:[%s7 + $0x10] sm:$0xf]
    %v1289 = vld [vmem:[%s7 + $0x14] sm:$0xf]
    %v1290 = vld [vmem:[%s7 + $0x18] sm:$0xf]
    %v1291 = vld [vmem:[%s7 + $0x1c] sm:$0xf]
    %v1292 = vld [vmem:[%s7 + $0x20] sm:$0xf]
    %v1293 = vld [vmem:[%s7 + $0x24] sm:$0xf]
    %v1294 = vld [vmem:[%s7 + $0x28] sm:$0xf]
    %v1295 = vld [vmem:[%s7 + $0x2c] sm:$0xf]
    %v1296 = vld [vmem:[%s7 + $0x30] sm:$0xf]
    %v1297 = vld [vmem:[%s7 + $0x34] sm:$0xf]
    %v1298 = vld [vmem:[%s7 + $0x38] sm:$0xf]
    %v1299 = vld [vmem:[%s7 + $0x3c] sm:$0xf]
    %v1300 = vld [vmem:[%s7 + $0x40] sm:$0xf]
    %v1301 = vld [vmem:[%s7 + $0x44] sm:$0xf]
    %v1302 = vld [vmem:[%s7 + $0x48] sm:$0xf]
    %v1303 = vld [vmem:[%s7 + $0x4c] sm:$0xf]
    %v1304 = vld [vmem:[%s7 + $0x50] sm:$0xf]
    %v1305 = vld [vmem:[%s7 + $0x54] sm:$0xf]
    %v1306 = vld [vmem:[%s7 + $0x58] sm:$0xf]
    %v1307 = vld [vmem:[%s7 + $0x5c] sm:$0xf]
    %v1308 = vld [vmem:[%s7 + $0x60] sm:$0xf]
    %v1309 = vld [vmem:[%s7 + $0x64] sm:$0xf]
    %v1310 = vld [vmem:[%s7 + $0x68] sm:$0xf]
    %v1311 = vld [vmem:[%s7 + $0x6c] sm:$0xf]
    %v1312 = vld [vmem:[%s7 + $0x70] sm:$0xf]
    %v1313 = vld [vmem:[%s7 + $0x74] sm:$0xf]
    %v1314 = vld [vmem:[%s7 + $0x78] sm:$0xf]
    %v1315 = vld [vmem:[%s7 + $0x7c] sm:$0xf]
    %v1316 = vld [vmem:[%s7 + $0x80] sm:$0xf]
    %v1317 = vld [vmem:[%s7 + $0x84] sm:$0xf]
    %v1318 = vld [vmem:[%s7 + $0x88] sm:$0xf]
    %v1319 = vld [vmem:[%s7 + $0x8c] sm:$0xf]
    %v1320 = vld [vmem:[%s7 + $0x90] sm:$0xf]
    %v1321 = vld [vmem:[%s7 + $0x94] sm:$0xf]
    %v1322 = vld [vmem:[%s7 + $0x98] sm:$0xf]
    %v1323 = vld [vmem:[%s7 + $0x9c] sm:$0xf]
    %v1324 = vld [vmem:[%s7 + $0xa0] sm:$0xf]
    %v1325 = vld [vmem:[%s7 + $0xa4] sm:$0xf]
    %v1326 = vld [vmem:[%s7 + $0xa8] sm:$0xf]
    %v1327 = vld [vmem:[%s7 + $0xac] sm:$0xf]
    %v1328 = vld [vmem:[%s7 + $0xb0] sm:$0xf]
    %v1329 = vld [vmem:[%s7 + $0xb4] sm:$0xf]
    %v1330 = vld [vmem:[%s7 + $0xb8] sm:$0xf]
    %v1331 = vld [vmem:[%s7 + $0xbc] sm:$0xf]
    %v1332 = vld [vmem:[#allocation7] sm:$0x1]
    %v1334 = vperm.slane %v1332, 0
    %v1384 = vunpack.c.l.b16 %v1284
    %v1385 = vunpack.c.l.b16 %v1285
    %v1386 = vunpack.c.l.b16 %v1286
    %v1387 = vunpack.c.l.b16 %v1287
    %v1388 = vunpack.c.l.b16 %v1288
    %v1389 = vunpack.c.l.b16 %v1289
    %v1390 = vunpack.c.l.b16 %v1290
    %v1391 = vunpack.c.l.b16 %v1291
    %v1392 = vunpack.c.l.b16 %v1292
    %v1393 = vunpack.c.l.b16 %v1293
    %v1394 = vunpack.c.l.b16 %v1294
    %v1395 = vunpack.c.l.b16 %v1295
    %v1396 = vunpack.c.l.b16 %v1296
    %v1397 = vunpack.c.l.b16 %v1297
    %v1398 = vunpack.c.l.b16 %v1298
    %v1399 = vunpack.c.l.b16 %v1299
    %v1400 = vunpack.c.l.b16 %v1300
    %v1401 = vunpack.c.l.b16 %v1301
    %v1402 = vunpack.c.l.b16 %v1302
    %v1403 = vunpack.c.l.b16 %v1303
    %v1404 = vunpack.c.l.b16 %v1304
    %v1405 = vunpack.c.l.b16 %v1305
    %v1406 = vunpack.c.l.b16 %v1306
    %v1407 = vunpack.c.l.b16 %v1307
    %v1408 = vunpack.c.l.b16 %v1308
    %v1409 = vunpack.c.l.b16 %v1309
    %v1410 = vunpack.c.l.b16 %v1310
    %v1411 = vunpack.c.l.b16 %v1311
    %v1412 = vunpack.c.l.b16 %v1312
    %v1413 = vunpack.c.l.b16 %v1313
    %v1414 = vunpack.c.l.b16 %v1314
    %v1415 = vunpack.c.l.b16 %v1315
    %v1416 = vunpack.c.l.b16 %v1316
    %v1417 = vunpack.c.l.b16 %v1317
    %v1418 = vunpack.c.l.b16 %v1318
    %v1419 = vunpack.c.l.b16 %v1319
    %v1420 = vunpack.c.l.b16 %v1320
    %v1421 = vunpack.c.l.b16 %v1321
    %v1422 = vunpack.c.l.b16 %v1322
    %v1423 = vunpack.c.l.b16 %v1323
    %v1424 = vunpack.c.l.b16 %v1324
    %v1425 = vunpack.c.l.b16 %v1325
    %v1426 = vunpack.c.l.b16 %v1326
    %v1427 = vunpack.c.l.b16 %v1327
    %v1428 = vunpack.c.l.b16 %v1328
    %v1429 = vunpack.c.l.b16 %v1329
    %v1430 = vunpack.c.l.b16 %v1330
    %v1431 = vunpack.c.l.b16 %v1331
    %v1432 = vpack.c.b16 %v1385, %v1384
    %v1433 = vpack.c.b16 %v1387, %v1386
    %v1434 = vpack.c.b16 %v1389, %v1388
    %v1435 = vpack.c.b16 %v1391, %v1390
    %v1436 = vpack.c.b16 %v1393, %v1392
    %v1437 = vpack.c.b16 %v1395, %v1394
    %v1438 = vpack.c.b16 %v1397, %v1396
    %v1439 = vpack.c.b16 %v1399, %v1398
    %v1440 = vpack.c.b16 %v1401, %v1400
    %v1441 = vpack.c.b16 %v1403, %v1402
    %v1442 = vpack.c.b16 %v1405, %v1404
    %v1443 = vpack.c.b16 %v1407, %v1406
    %v1444 = vpack.c.b16 %v1409, %v1408
    %v1445 = vpack.c.b16 %v1411, %v1410
    %v1446 = vpack.c.b16 %v1413, %v1412
    %v1447 = vpack.c.b16 %v1415, %v1414
    %v1448 = vpack.c.b16 %v1417, %v1416
    %v1449 = vpack.c.b16 %v1419, %v1418
    %v1450 = vpack.c.b16 %v1421, %v1420
    %v1451 = vpack.c.b16 %v1423, %v1422
    %v1452 = vpack.c.b16 %v1425, %v1424
    %v1453 = vpack.c.b16 %v1427, %v1426
    %v1454 = vpack.c.b16 %v1429, %v1428
    %v1455 = vpack.c.b16 %v1431, %v1430
    %1480 = vmatpush.bf16.msra.mxu0 %v1439
    %1481 = vmatpush.bf16.msra.mxu0 %v1438
    %1482 = vmatpush.bf16.msra.mxu0 %v1437
    %1483 = vmatpush.bf16.msra.mxu0 %v1436
    %1484 = vmatpush.bf16.msra.mxu0 %v1435
    %1485 = vmatpush.bf16.msra.mxu0 %v1434
    %1486 = vmatpush.bf16.msra.mxu0 %v1433
    %1487 = vmatpush.bf16.msra.mxu0 %v1432
    %1488 = vmatmul.bf16.gmra.mxu0 %v1281
    %v1489 = vpop.f32.mrf.mxu0
    %v1490 = vadd.f32 %v1334, %v1489
    %v1491 = vpop.f32.mrf.mxu0
    %v1492 = vadd.f32 %v1334, %v1491
    %1493 = vdwg.mxu0
    %1494 = vmatpush.bf16.msra.mxu0 %v1447
    %1495 = vmatpush.bf16.msra.mxu0 %v1446
    %1496 = vmatpush.bf16.msra.mxu0 %v1445
    %1497 = vmatpush.bf16.msra.mxu0 %v1444
    %1498 = vmatpush.bf16.msra.mxu0 %v1443
    %1499 = vmatpush.bf16.msra.mxu0 %v1442
    %1500 = vmatpush.bf16.msra.mxu0 %v1441
    %1501 = vmatpush.bf16.msra.mxu0 %v1440
    %1502 = vmatmul.bf16.gmra.mxu0 %v1282
    %v1503 = vpop.f32.mrf.mxu0
    %v1504 = vadd.f32 %v1490, %v1503
    %v1505 = vpop.f32.mrf.mxu0
    %v1506 = vadd.f32 %v1492, %v1505
    %1507 = vdwg.mxu0
    %1508 = vmatpush.bf16.msra.mxu0 %v1455
    %1509 = vmatpush.bf16.msra.mxu0 %v1454
    %1510 = vmatpush.bf16.msra.mxu0 %v1453
    %1511 = vmatpush.bf16.msra.mxu0 %v1452
    %1512 = vmatpush.bf16.msra.mxu0 %v1451
    %1513 = vmatpush.bf16.msra.mxu0 %v1450
    %1514 = vmatpush.bf16.msra.mxu0 %v1449
    %1515 = vmatpush.bf16.msra.mxu0 %v1448
    %1516 = vmatmul.bf16.gmra.mxu0 %v1283
    %v1517 = vpop.f32.mrf.mxu0
    %v1518 = vadd.f32 %v1504, %v1517
    %v1519 = vpop.f32.mrf.mxu0
    %v1520 = vadd.f32 %v1506, %v1519
    %1521 = vdwg.mxu0
    %v1522 = vadd.f32 %v1518, %v1235
    %v1523 = vadd.f32 %v1520, %v1237
    %v1524 = vmax.f32 %v1522, 0.0
    %v1525 = vmax.f32 %v1523, 0.0
    %v1526 = vld [vmem:[#allocation12] sm:$0xff]
    %vm1527 = vcmask 130048
    %v1529 = vsel %vm1527, %v1526, 0
    %1531 = vmatpush.msra.mxu0 0.0
    %1532 = vmatpush.msra.mxu0 0.0
    %1533 = vmatpush.msra.mxu0 0.0
    %1534 = vmatpush.msra.mxu0 0.0
    %1535 = vmatpush.msra.mxu0 0.0
    %1536 = vmatpush.msra.mxu0 0.0
    %1537 = vmatpush.msra.mxu0 0.0
    %1538 = vmatpush.msra.mxu0 0.0
    %1539 = vmatpush.msra.mxu0 0.0
    %1540 = vmatpush.msra.mxu0 0.0
    %1541 = vmatpush.msra.mxu0 0.0
    %1542 = vmatpush.msra.mxu0 0.0
    %1543 = vmatpush.msra.mxu0 0.0
    %1544 = vmatpush.msra.mxu0 0.0
    %1545 = vmatpush.msra.mxu0 %v1525
    %1546 = vmatpush.msra.mxu0 %v1524
    %1547 = vmatmul.f32.gmra.mxu0 %v1529
    %v1548 = vpop.f32.mrf.mxu0
    %v1549 = vadd.f32 0.0, %v1548
    %1550 = vdwg.mxu0
    %v1551 = vld [vmem:[%s14] sm:$0xff]
    %v1552 = vld [vmem:[%s14 + $0x8] sm:$0xff]
    %v1553 = vld [vmem:[%s14 + $0x10] sm:$0xff]
    %v1554 = vld [vmem:[%s14 + $0x18] sm:$0xff]
    %v1555 = vld [vmem:[%s14 + $0x20] sm:$0xff]
    %v1556 = vld [vmem:[%s14 + $0x28] sm:$0xff]
    %v1557 = vld [vmem:[%s14 + $0x30] sm:$0xff]
    %v1558 = vld [vmem:[%s14 + $0x38] sm:$0xff]
    %v1559 = vld [vmem:[%s14 + $0x40] sm:$0xff]
    %v1560 = vld [vmem:[%s14 + $0x48] sm:$0xff]
    %v1561 = vld [vmem:[%s14 + $0x50] sm:$0xff]
    %v1562 = vld [vmem:[%s14 + $0x58] sm:$0xff]
    %v1563 = vld [vmem:[%s14 + $0x60] sm:$0xff]
    %v1564 = vld [vmem:[%s14 + $0x68] sm:$0xff]
    %v1565 = vld [vmem:[%s14 + $0x70] sm:$0xff]
    %v1566 = vld [vmem:[%s14 + $0x78] sm:$0xff]
    %1567 = vmatpush.msra.mxu0 %v1566
    %1568 = vmatpush.msra.mxu0 %v1565
    %1569 = vmatpush.msra.mxu0 %v1564
    %1570 = vmatpush.msra.mxu0 %v1563
    %1571 = vmatpush.msra.mxu0 %v1562
    %1572 = vmatpush.msra.mxu0 %v1561
    %1573 = vmatpush.msra.mxu0 %v1560
    %1574 = vmatpush.msra.mxu0 %v1559
    %1575 = vmatpush.msra.mxu0 %v1558
    %1576 = vmatpush.msra.mxu0 %v1557
    %1577 = vmatpush.msra.mxu0 %v1556
    %1578 = vmatpush.msra.mxu0 %v1555
    %1579 = vmatpush.msra.mxu0 %v1554
    %1580 = vmatpush.msra.mxu0 %v1553
    %1581 = vmatpush.msra.mxu0 %v1552
    %1582 = vmatpush.msra.mxu0 %v1551
    %1583 = vmatmul.f32.gmra.mxu0 %v1549
    %v1584 = vpop.f32.mrf.mxu0
    %v1585 = vadd.f32 0.0, %v1584
    %1586 = vdwg.mxu0
    %v1587 = vld [vmem:[%s24] sm:$0xff]
    %v1588 = vld [vmem:[%s25] sm:$0xff]
    %v1589 = vrot.slane %v1585, 7
    %1591 = vset.pattern.permute.xlu0 0
    %1592 = vperm.xlu0 %1591, %v1587
    %v1593 = vpop.permute.xlu0 %1592
    %v1595 = vmul.f32 %v1589, %v1593
    %v1596 = vrot.slane %v1585, 1
    %1598 = vset.pattern.permute.xlu0 0
    %1599 = vperm.xlu0 %1598, %v1588
    %v1600 = vpop.permute.xlu0 %1599
    %v1602 = vmul.f32 %v1596, %v1600
    %1604 = vrot.lane.b32.xlu0 %v1585, 64
    %v1605 = vpop.permute.xlu0 %1604
    %v1607 = vsel %vm277, %v1595, %v1605
    %v1608 = vpack.c.bf16 %v1607, %v1607
    %v1609 = vpack.c.bf16 %v1602, %v1602
    %v1610 = vld [vmem:[%s9] sm:$0xf]
    %v1611 = vld [vmem:[%s9 + $0x4] sm:$0xf]
    %v1612 = vld [vmem:[%s9 + $0x8] sm:$0xf]
    %v1613 = vld [vmem:[%s9 + $0xc] sm:$0xf]
    %v1614 = vld [vmem:[%s9 + $0x10] sm:$0xf]
    %v1615 = vld [vmem:[%s9 + $0x14] sm:$0xf]
    %v1616 = vld [vmem:[%s9 + $0x18] sm:$0xf]
    %v1617 = vld [vmem:[%s9 + $0x1c] sm:$0xf]
    %v1618 = vld [vmem:[%s9 + $0x20] sm:$0xf]
    %v1619 = vld [vmem:[%s9 + $0x24] sm:$0xf]
    %v1620 = vld [vmem:[%s9 + $0x28] sm:$0xf]
    %v1621 = vld [vmem:[%s9 + $0x2c] sm:$0xf]
    %v1622 = vld [vmem:[%s9 + $0x30] sm:$0xf]
    %v1623 = vld [vmem:[%s9 + $0x34] sm:$0xf]
    %v1624 = vld [vmem:[%s9 + $0x38] sm:$0xf]
    %v1625 = vld [vmem:[%s9 + $0x3c] sm:$0xf]
    %v1626 = vld [vmem:[%s9 + $0x40] sm:$0xf]
    %v1627 = vld [vmem:[%s9 + $0x44] sm:$0xf]
    %v1628 = vld [vmem:[%s9 + $0x48] sm:$0xf]
    %v1629 = vld [vmem:[%s9 + $0x4c] sm:$0xf]
    %v1630 = vld [vmem:[%s9 + $0x50] sm:$0xf]
    %v1631 = vld [vmem:[%s9 + $0x54] sm:$0xf]
    %v1632 = vld [vmem:[%s9 + $0x58] sm:$0xf]
    %v1633 = vld [vmem:[%s9 + $0x5c] sm:$0xf]
    %v1634 = vld [vmem:[#allocation9] sm:$0x1]
    %v1636 = vperm.slane %v1634, 0
    %v1662 = vunpack.c.l.b16 %v1610
    %v1663 = vunpack.c.l.b16 %v1611
    %v1664 = vunpack.c.l.b16 %v1612
    %v1665 = vunpack.c.l.b16 %v1613
    %v1666 = vunpack.c.l.b16 %v1614
    %v1667 = vunpack.c.l.b16 %v1615
    %v1668 = vunpack.c.l.b16 %v1616
    %v1669 = vunpack.c.l.b16 %v1617
    %v1670 = vunpack.c.l.b16 %v1618
    %v1671 = vunpack.c.l.b16 %v1619
    %v1672 = vunpack.c.l.b16 %v1620
    %v1673 = vunpack.c.l.b16 %v1621
    %v1674 = vunpack.c.l.b16 %v1622
    %v1675 = vunpack.c.l.b16 %v1623
    %v1676 = vunpack.c.l.b16 %v1624
    %v1677 = vunpack.c.l.b16 %v1625
    %v1678 = vunpack.c.l.b16 %v1626
    %v1679 = vunpack.c.l.b16 %v1627
    %v1680 = vunpack.c.l.b16 %v1628
    %v1681 = vunpack.c.l.b16 %v1629
    %v1682 = vunpack.c.l.b16 %v1630
    %v1683 = vunpack.c.l.b16 %v1631
    %v1684 = vunpack.c.l.b16 %v1632
    %v1685 = vunpack.c.l.b16 %v1633
    %v1686 = vpack.c.b16 %v1663, %v1662
    %v1687 = vpack.c.b16 %v1665, %v1664
    %v1688 = vpack.c.b16 %v1667, %v1666
    %v1689 = vpack.c.b16 %v1669, %v1668
    %v1690 = vpack.c.b16 %v1671, %v1670
    %v1691 = vpack.c.b16 %v1673, %v1672
    %v1692 = vpack.c.b16 %v1675, %v1674
    %v1693 = vpack.c.b16 %v1677, %v1676
    %v1694 = vpack.c.b16 %v1679, %v1678
    %v1695 = vpack.c.b16 %v1681, %v1680
    %v1696 = vpack.c.b16 %v1683, %v1682
    %v1697 = vpack.c.b16 %v1685, %v1684
    %v1711 = vsel %vm277, %v1609, 0
    %1713 = vmatpush.bf16.msra.mxu0 %v1693
    %1714 = vmatpush.bf16.msra.mxu0 %v1692
    %1715 = vmatpush.bf16.msra.mxu0 %v1691
    %1716 = vmatpush.bf16.msra.mxu0 %v1690
    %1717 = vmatpush.bf16.msra.mxu0 %v1689
    %1718 = vmatpush.bf16.msra.mxu0 %v1688
    %1719 = vmatpush.bf16.msra.mxu0 %v1687
    %1720 = vmatpush.bf16.msra.mxu0 %v1686
    %1721 = vmatmul.bf16.gmra.mxu0 %v1608
    %v1722 = vpop.f32.mrf.mxu0
    %v1723 = vadd.f32 %v1636, %v1722
    %v1724 = vpop.f32.mrf.mxu0
    %1725 = vdwg.mxu0
    %1726 = vmatpush.bf16.msra.mxu0 0
    %1727 = vmatpush.bf16.msra.mxu0 0
    %1728 = vmatpush.bf16.msra.mxu0 0
    %1729 = vmatpush.bf16.msra.mxu0 0
    %1730 = vmatpush.bf16.msra.mxu0 %v1697
    %1731 = vmatpush.bf16.msra.mxu0 %v1696
    %1732 = vmatpush.bf16.msra.mxu0 %v1695
    %1733 = vmatpush.bf16.msra.mxu0 %v1694
    %1734 = vmatmul.bf16.gmra.mxu0 %v1711
    %v1735 = vpop.f32.mrf.mxu0
    %v1736 = vadd.f32 %v1723, %v1735
    %v1737 = vpop.f32.mrf.mxu0
    %1738 = vdwg.mxu0
    %v1739 = vpack.c.bf16 %v182, %v181
    %v1740 = vpack.c.bf16 %v184, %v183
    %v1741 = vld [vmem:[%s19] sm:$0xf]
    %v1742 = vld [vmem:[%s19 + $0x4] sm:$0xf]
    %v1743 = vld [vmem:[%s19 + $0x8] sm:$0xf]
    %v1744 = vld [vmem:[%s19 + $0xc] sm:$0xf]
    %v1745 = vld [vmem:[%s19 + $0x10] sm:$0xf]
    %v1746 = vld [vmem:[%s19 + $0x14] sm:$0xf]
    %v1747 = vld [vmem:[%s19 + $0x18] sm:$0xf]
    %v1748 = vld [vmem:[%s19 + $0x1c] sm:$0xf]
    %v1749 = vld [vmem:[%s15] sm:$0xff]
    %v1750 = vld [vmem:[%s15 + $0x8] sm:$0xff]
    %v1751 = vld [vmem:[%s15 + $0x10] sm:$0xff]
    %v1752 = vld [vmem:[%s15 + $0x18] sm:$0xff]
    %v1753 = vpack.c.bf16 %v1265, %v1263
    %v1754 = vld [vmem:[%s16] sm:$0xf]
    %v1755 = vld [vmem:[%s16 + $0x4] sm:$0xf]
    %v1756 = vld [vmem:[%s16 + $0x8] sm:$0xf]
    %v1757 = vld [vmem:[%s16 + $0xc] sm:$0xf]
    %v1758 = vld [vmem:[%s16 + $0x10] sm:$0xf]
    %v1759 = vld [vmem:[%s16 + $0x14] sm:$0xf]
    %v1760 = vld [vmem:[%s16 + $0x18] sm:$0xf]
    %v1761 = vld [vmem:[%s16 + $0x1c] sm:$0xf]
    %v1770 = vunpack.c.l.b16 %v1754
    %v1771 = vunpack.c.l.b16 %v1755
    %v1772 = vunpack.c.l.b16 %v1756
    %v1773 = vunpack.c.l.b16 %v1757
    %v1774 = vunpack.c.l.b16 %v1758
    %v1775 = vunpack.c.l.b16 %v1759
    %v1776 = vunpack.c.l.b16 %v1760
    %v1777 = vunpack.c.l.b16 %v1761
    %v1778 = vpack.c.b16 %v1771, %v1770
    %v1779 = vpack.c.b16 %v1773, %v1772
    %v1780 = vpack.c.b16 %v1775, %v1774
    %v1781 = vpack.c.b16 %v1777, %v1776
    %v1787 = vsel %vm277, %v1753, 0
    %1789 = vmatpush.bf16.msra.mxu0 0
    %1790 = vmatpush.bf16.msra.mxu0 0
    %1791 = vmatpush.bf16.msra.mxu0 0
    %1792 = vmatpush.bf16.msra.mxu0 0
    %1793 = vmatpush.bf16.msra.mxu0 %v1781
    %1794 = vmatpush.bf16.msra.mxu0 %v1780
    %1795 = vmatpush.bf16.msra.mxu0 %v1779
    %1796 = vmatpush.bf16.msra.mxu0 %v1778
    %1797 = vmatmul.bf16.gmra.mxu0 %v1787
    %v1798 = vpop.f32.mrf.mxu0
    %v1799 = vadd.f32 0.0, %v1798
    %v1800 = vpop.f32.mrf.mxu0
    %v1801 = vadd.f32 0.0, %v1800
    %1802 = vdwg.mxu0
    %v1804 = vsel %vm1527, %v1749, 0
    %v1807 = vsel %vm1527, %v1750, 0
    %v1810 = vsel %vm1527, %v1751, 0
    %v1813 = vsel %vm1527, %v1752, 0
    %1815 = vmatpush.msra.mxu0 0.0
    %1816 = vmatpush.msra.mxu0 0.0
    %1817 = vmatpush.msra.mxu0 0.0
    %1818 = vmatpush.msra.mxu0 0.0
    %1819 = vmatpush.msra.mxu0 0.0
    %1820 = vmatpush.msra.mxu0 0.0
    %1821 = vmatpush.msra.mxu0 0.0
    %1822 = vmatpush.msra.mxu0 0.0
    %1823 = vmatpush.msra.mxu0 0.0
    %1824 = vmatpush.msra.mxu0 0.0
    %1825 = vmatpush.msra.mxu0 0.0
    %1826 = vmatpush.msra.mxu0 0.0
    %1827 = vmatpush.msra.mxu0 0.0
    %1828 = vmatpush.msra.mxu0 0.0
    %1829 = vmatpush.msra.mxu0 %v1801
    %1830 = vmatpush.msra.mxu0 %v1799
    %1831 = vmatmul.f32.gmra.mxu0 %v1804
    %v1832 = vpop.f32.mrf.mxu0
    %v1833 = vadd.f32 0.0, %v1832
    %1834 = vmatmul.f32.gmra.mxu0 %v1807
    %v1835 = vpop.f32.mrf.mxu0
    %v1836 = vadd.f32 0.0, %v1835
    %1837 = vmatmul.f32.gmra.mxu0 %v1810
    %v1838 = vpop.f32.mrf.mxu0
    %v1839 = vadd.f32 0.0, %v1838
    %1840 = vmatmul.f32.gmra.mxu0 %v1813
    %v1841 = vpop.f32.mrf.mxu0
    %v1842 = vadd.f32 0.0, %v1841
    %1843 = vdwg.mxu0
    %v1844 = vld [vmem:[%s17] sm:$0xff]
    %v1845 = vld [vmem:[%s17 + $0x8] sm:$0xff]
    %v1846 = vld [vmem:[%s17 + $0x10] sm:$0xff]
    %v1847 = vld [vmem:[%s17 + $0x18] sm:$0xff]
    %v1848 = vpack.c.bf16 %v1736, %v1736
    %v1849 = vld [vmem:[%s18] sm:$0xf]
    %v1850 = vld [vmem:[%s18 + $0x4] sm:$0xf]
    %v1851 = vld [vmem:[%s18 + $0x8] sm:$0xf]
    %v1852 = vld [vmem:[%s18 + $0xc] sm:$0xf]
    %v1853 = vld [vmem:[%s18 + $0x10] sm:$0xf]
    %v1854 = vld [vmem:[%s18 + $0x14] sm:$0xf]
    %v1855 = vld [vmem:[%s18 + $0x18] sm:$0xf]
    %v1856 = vld [vmem:[%s18 + $0x1c] sm:$0xf]
    %v1865 = vunpack.c.l.b16 %v1849
    %v1866 = vunpack.c.l.b16 %v1850
    %v1867 = vunpack.c.l.b16 %v1851
    %v1868 = vunpack.c.l.b16 %v1852
    %v1869 = vunpack.c.l.b16 %v1853
    %v1870 = vunpack.c.l.b16 %v1854
    %v1871 = vunpack.c.l.b16 %v1855
    %v1872 = vunpack.c.l.b16 %v1856
    %v1873 = vpack.c.b16 %v1866, %v1865
    %v1874 = vpack.c.b16 %v1868, %v1867
    %v1875 = vpack.c.b16 %v1870, %v1869
    %v1876 = vpack.c.b16 %v1872, %v1871
    %v1882 = vsel %vm277, %v1848, 0
    %1884 = vmatpush.bf16.msra.mxu0 0
    %1885 = vmatpush.bf16.msra.mxu0 0
    %1886 = vmatpush.bf16.msra.mxu0 0
    %1887 = vmatpush.bf16.msra.mxu0 0
    %1888 = vmatpush.bf16.msra.mxu0 %v1876
    %1889 = vmatpush.bf16.msra.mxu0 %v1875
    %1890 = vmatpush.bf16.msra.mxu0 %v1874
    %1891 = vmatpush.bf16.msra.mxu0 %v1873
    %1892 = vmatmul.bf16.gmra.mxu0 %v1882
    %v1893 = vpop.f32.mrf.mxu0
    %v1894 = vadd.f32 0.0, %v1893
    %v1895 = vpop.f32.mrf.mxu0
    %1896 = vdwg.mxu0
    %vm1897 = vcmask 64512
    %v1899 = vsel %vm1897, %v1844, 0
    %v1902 = vsel %vm1897, %v1845, 0
    %v1905 = vsel %vm1897, %v1846, 0
    %v1908 = vsel %vm1897, %v1847, 0
    %1910 = vmatpush.msra.mxu0 0.0
    %1911 = vmatpush.msra.mxu0 0.0
    %1912 = vmatpush.msra.mxu0 0.0
    %1913 = vmatpush.msra.mxu0 0.0
    %1914 = vmatpush.msra.mxu0 0.0
    %1915 = vmatpush.msra.mxu0 0.0
    %1916 = vmatpush.msra.mxu0 0.0
    %1917 = vmatpush.msra.mxu0 0.0
    %1918 = vmatpush.msra.mxu0 0.0
    %1919 = vmatpush.msra.mxu0 0.0
    %1920 = vmatpush.msra.mxu0 0.0
    %1921 = vmatpush.msra.mxu0 0.0
    %1922 = vmatpush.msra.mxu0 0.0
    %1923 = vmatpush.msra.mxu0 0.0
    %1924 = vmatpush.msra.mxu0 0.0
    %1925 = vmatpush.msra.mxu0 %v1894
    %1926 = vmatmul.f32.gmra.mxu0 %v1899
    %v1927 = vpop.f32.mrf.mxu0
    %v1928 = vadd.f32 0.0, %v1927
    %1929 = vmatmul.f32.gmra.mxu0 %v1902
    %v1930 = vpop.f32.mrf.mxu0
    %v1931 = vadd.f32 0.0, %v1930
    %1932 = vmatmul.f32.gmra.mxu0 %v1905
    %v1933 = vpop.f32.mrf.mxu0
    %v1934 = vadd.f32 0.0, %v1933
    %1935 = vmatmul.f32.gmra.mxu0 %v1908
    %v1936 = vpop.f32.mrf.mxu0
    %v1937 = vadd.f32 0.0, %v1936
    %1938 = vdwg.mxu0
    %v1947 = vunpack.c.l.b16 %v1741
    %v1948 = vunpack.c.l.b16 %v1742
    %v1949 = vunpack.c.l.b16 %v1743
    %v1950 = vunpack.c.l.b16 %v1744
    %v1951 = vunpack.c.l.b16 %v1745
    %v1952 = vunpack.c.l.b16 %v1746
    %v1953 = vunpack.c.l.b16 %v1747
    %v1954 = vunpack.c.l.b16 %v1748
    %v1955 = vpack.c.b16 %v1948, %v1947
    %v1956 = vpack.c.b16 %v1950, %v1949
    %v1957 = vpack.c.b16 %v1952, %v1951
    %v1958 = vpack.c.b16 %v1954, %v1953
    %v1964 = vsel %vm277, %v1739, 0
    %v1967 = vsel %vm277, %v1740, 0
    %1969 = vmatpush.bf16.msra.mxu0 0
    %1970 = vmatpush.bf16.msra.mxu0 0
    %1971 = vmatpush.bf16.msra.mxu0 0
    %1972 = vmatpush.bf16.msra.mxu0 0
    %1973 = vmatpush.bf16.msra.mxu0 %v1958
    %1974 = vmatpush.bf16.msra.mxu0 %v1957
    %1975 = vmatpush.bf16.msra.mxu0 %v1956
    %1976 = vmatpush.bf16.msra.mxu0 %v1955
    %1977 = vmatmul.bf16.gmra.mxu0 %v1964
    %v1978 = vpop.f32.mrf.mxu0
    %v1979 = vadd.f32 %v1833, %v1978
    %v1980 = vpop.f32.mrf.mxu0
    %v1981 = vadd.f32 %v1836, %v1980
    %1982 = vmatmul.bf16.gmra.mxu0 %v1967
    %v1983 = vpop.f32.mrf.mxu0
    %v1984 = vadd.f32 %v1839, %v1983
    %v1985 = vpop.f32.mrf.mxu0
    %v1986 = vadd.f32 %v1842, %v1985
    %1987 = vdwg.mxu0
    %v1988 = vadd.f32 %v1979, %v1928
    %v1989 = vadd.f32 %v1981, %v1931
    %v1990 = vadd.f32 %v1984, %v1934
    %v1991 = vadd.f32 %v1986, %v1937
    %v1992 = vmax.f32 %v1988, 0.0
    %v1993 = vmax.f32 %v1989, 0.0
    %v1994 = vmax.f32 %v1990, 0.0
    %v1995 = vmax.f32 %v1991, 0.0
    %1996 = vst [vmem:[%s26] sm:$0xff] %v1992
    %1997 = vst [vmem:[%s26 + $0x8] sm:$0xff] %v1993
    %1998 = vst [vmem:[%s26 + $0x10] sm:$0xff] %v1994
    %1999 = vst [vmem:[%s26 + $0x18] sm:$0xff] %v1995
    // Predicated region
    $region134: #{feature_block_forward.1} parent=1 // pred_check
      _
    $region135: #{feature_block_forward.1} parent=1 // pred_check_branch
      %2001 = sbr.rel (0) target = $region137
    $region136: #{feature_block_forward.1} parent=1 // pred_region
      _
    $region137: #{feature_block_forward.1} parent=1 // pred_fallthru
      _
    // Predicated region
    $region138: #{feature_block_forward.1} parent=1 // pred_check
      _
    $region139: #{feature_block_forward.1} parent=1 // pred_check_branch
      %2003 = sbr.rel (0) target = $region141
    $region140: #{feature_block_forward.1} parent=1 // pred_region
      _
    $region141: #{feature_block_forward.1} parent=1 // pred_fallthru
      _
    %2004 = vsyncpa [#allocation3], 1
    %2005 = vsyncpa [#allocation5], 1
    %2006 = vsyncpa [#allocation8], 1
    %2007 = vsyncpa [#allocation11], 1

</llo_original>
